<compile_context>
chip_gen: v5e
topology: v5e:2x2
jax: 0.10.0
libtpu: 0.0.40
codegen_flags: <defaults>
</compile_context>

<pallas_src>
import math
import jax
import jax.numpy as jnp
from jax import lax
from jax.experimental import pallas as pl
from jax.experimental.pallas import tpu as pltpu

# ----------------------------- tiny-BERT config -----------------------------
B, S = 2, 8            # batch, sequence length
H = 32                 # hidden size
NUM_HEADS = 4
HEAD_DIM = H // NUM_HEADS
FFN = 128              # intermediate size (4 * H)
NUM_LAYERS = 2
VOCAB = 100
MAX_POS = 32
REG_HIDDEN = 128       # regressor head: Linear(H, 128) -> ReLU -> Linear(128, 1)
OUT_PAD = 128          # lane-dense padded width of the final output slab
LN_EPS = 1e-12
NEG_INF = -1e9

# vector-slab row layout
VEC_ROWS_RAW = 2 + NUM_LAYERS * 8 + 3
VEC_ROWS = ((VEC_ROWS_RAW + 7) // 8) * 8


# ------------------------------ kernel helpers -------------------------------
def _layer_norm(x, gamma, beta):
    mean = jnp.mean(x, axis=-1, keepdims=True)
    var = jnp.mean(jnp.square(x - mean), axis=-1, keepdims=True)
    return (x - mean) * lax.rsqrt(var + LN_EPS) * gamma + beta


def _gelu(x):
    # TODO(synk): HF BERT uses exact erf-GELU; tanh approximation used for Mosaic-safe lowering.
    return jax.nn.gelu(x, approximate=True)


def _softmax_lastdim(s):
    s = s - jnp.max(s, axis=-1, keepdims=True)
    p = jnp.exp(s)
    # divide -> EUP reciprocal + VALU multiply (frees the VALU slot)
    return p * pl.reciprocal(jnp.sum(p, axis=-1, keepdims=True), approx=True)


def _bf(x):
    return x.astype(jnp.bfloat16)


# ------------------------- fused whole-model kernel ---------------------------
def fused_model_kernel(emb_ref, mask_ref, wqkvo_ref, w1_ref, w2_ref,
                       vec_ref, head_w_ref, o_ref):
    Bx, Sx, Hx = emb_ref.shape
    BS = Bx * Sx

    vec = vec_ref[...]                                  # (VEC_ROWS, 128) f32, loaded once

    def vrow(r, w):                                     # (1, w) f32 parameter row
        return vec[r:r + 1, 0:w]

    # ---- embedding LayerNorm (batch folded into sublanes: (B*S, H)).
    x = _layer_norm(emb_ref[...].reshape(BS, Hx), vrow(0, Hx), vrow(1, Hx))

    # ---- precomputed block-diagonal additive mask over flattened (query, key) positions.
    add_mask = mask_ref[...]                            # (BS, BS) f32

    # ---- encoder layers (static unroll; everything stays VMEM-resident).
    for l in range(NUM_LAYERS):
        base = 2 + l * 8
        wqkvo_l = wqkvo_ref[l]                          # (H, 4H) bf16  [Wq*s | Wk | Wv | Wo]
        wqkv = wqkvo_l[:, 0:3 * Hx]                     # (H, 3H) bf16
        wo = wqkvo_l[:, 3 * Hx:4 * Hx]                  # (H, H)  bf16

        # fused QKV projection: one (16,32)x(32,96) bf16 matmul; 1/sqrt(d) folded into Wq/bq.
        qkv = jnp.dot(_bf(x), wqkv,
                      preferred_element_type=jnp.float32) + vrow(base + 0, 3 * Hx)

        ctxs = []
        for h in range(NUM_HEADS):                       # static unroll over heads
            lo = h * HEAD_DIM
            qh = qkv[:, lo:lo + HEAD_DIM]                            # (BS, Dh)
            kh = qkv[:, Hx + lo:Hx + lo + HEAD_DIM]                  # (BS, Dh)
            vh = qkv[:, 2 * Hx + lo:2 * Hx + lo + HEAD_DIM]          # (BS, Dh)
            # scores: one 2-D (16,16) matmul, Q @ K^T via dot_general (no transpose op).
            s = lax.dot_general(_bf(qh), _bf(kh),
                                dimension_numbers=(((1,), (1,)), ((), ())),
                                preferred_element_type=jnp.float32) + add_mask
            p = _softmax_lastdim(s)                                  # f32 softmax
            ctxs.append(jnp.dot(_bf(p), _bf(vh),
                                preferred_element_type=jnp.float32))  # (BS, Dh)

        ctx = jnp.concatenate(ctxs, axis=-1)                          # (BS, H)
        attn = jnp.dot(_bf(ctx), wo,
                       preferred_element_type=jnp.float32) + vrow(base + 1, Hx)
        h1 = _layer_norm(x + attn, vrow(base + 2, Hx), vrow(base + 3, Hx))

        inner = _gelu(jnp.dot(_bf(h1), w1_ref[l],
                              preferred_element_type=jnp.float32) + vrow(base + 4, FFN))
        ff = jnp.dot(_bf(inner), w2_ref[l],
                     preferred_element_type=jnp.float32) + vrow(base + 5, Hx)
        x = _layer_norm(h1 + ff, vrow(base + 6, Hx), vrow(base + 7, Hx))

    # ---- [CLS] rows (row 0 of each batch block) via static sublane slices.
    cls = jnp.concatenate([x[b * Sx:b * Sx + 1, :] for b in range(Bx)], axis=0)   # (B, H)

    # ---- BERT pooler (dense + tanh) + regressor head.
    hw = head_w_ref[...]                                 # (2H + REG_HIDDEN, 128) bf16
    vbase = 2 + NUM_LAYERS * 8
    pooled = jnp.tanh(
        jnp.dot(_bf(cls), hw[0:Hx, 0:Hx],
                preferred_element_type=jnp.float32) + vrow(vbase + 0, Hx))
    hid = jnp.maximum(
        jnp.dot(_bf(pooled), hw[Hx:2 * Hx, :],
                preferred_element_type=jnp.float32) + vrow(vbase + 1, REG_HIDDEN), 0.0)
    # Lane-dense (B, 128) store; the real output lives in column 0, the rest is zero padding.
    o_ref[...] = jnp.dot(_bf(hid), hw[2 * Hx:2 * Hx + REG_HIDDEN, :],
                         preferred_element_type=jnp.float32) + vrow(vbase + 2, OUT_PAD)


# ------------------------------- Pallas wrapper -------------------------------
def fused_forward_pallas(emb, add_mask, pk):
    operands = (emb, add_mask, pk['wqkvo'], pk['w1'], pk['w2'], pk['vec'], pk['head_w'])
    return pl.pallas_call(
        fused_model_kernel,
        out_shape=jax.ShapeDtypeStruct((emb.shape[0], OUT_PAD), jnp.float32),
        in_specs=[pl.BlockSpec(memory_space=pltpu.MemorySpace.VMEM) for _ in operands],
        out_specs=pl.BlockSpec(memory_space=pltpu.MemorySpace.VMEM),
    )(*operands)


# --------------------------------- parameters ---------------------------------
def init_params(key):
    ks = iter(jax.random.split(key, 64))

    def w(shape):
        return jax.random.normal(next(ks), shape, jnp.float32) * 0.02

    params = {
        'word_emb': w((VOCAB, H)),
        'pos_emb': w((MAX_POS, H)),
        'type_emb': w((2, H)),
        'emb_ln_g': jnp.ones((H,), jnp.float32),
        'emb_ln_b': jnp.zeros((H,), jnp.float32),
        'pooler_w': w((H, H)),
        'pooler_b': jnp.zeros((H,), jnp.float32),
        'reg_w1': w((H, REG_HIDDEN)),
        'reg_b1': jnp.zeros((REG_HIDDEN,), jnp.float32),
        'reg_w2': w((REG_HIDDEN, 1)),
        'reg_b2': jnp.zeros((1,), jnp.float32),
        'layers': [],
    }
    for _ in range(NUM_LAYERS):
        params['layers'].append({
            'wq': w((H, H)), 'bq': jnp.zeros((H,), jnp.float32),
            'wk': w((H, H)), 'bk': jnp.zeros((H,), jnp.float32),
            'wv': w((H, H)), 'bv': jnp.zeros((H,), jnp.float32),
            'wo': w((H, H)), 'bo': jnp.zeros((H,), jnp.float32),
            'ln1_g': jnp.ones((H,), jnp.float32), 'ln1_b': jnp.zeros((H,), jnp.float32),
            'w1': w((H, FFN)), 'b1': jnp.zeros((FFN,), jnp.float32),
            'w2': w((FFN, H)), 'b2': jnp.zeros((H,), jnp.float32),
            'ln2_g': jnp.ones((H,), jnp.float32), 'ln2_b': jnp.zeros((H,), jnp.float32),
        })
    return params


def pack_params(params):
    """One-time repack: fused QKV+O weight slabs (bf16), stacked FFN weights (bf16),
    one f32 slab for every small vector parameter, one bf16 slab for head weights.
    NOTE: weight convention is (in, out) with jnp.dot(x, W); real PyTorch nn.Linear
    weights ((out, in)) would need a transpose here."""
    layers = params['layers']
    scale = 1.0 / math.sqrt(HEAD_DIM)

    # [Wq*scale | Wk | Wv | Wo] per layer -> (L, H, 4H) bf16
    wqkvo = jnp.stack([
        jnp.concatenate([p['wq'] * scale, p['wk'], p['wv'], p['wo']], axis=1)
        for p in layers]).astype(jnp.bfloat16)
    w1 = jnp.stack([p['w1'] for p in layers]).astype(jnp.bfloat16)    # (L, H, FFN)
    w2 = jnp.stack([p['w2'] for p in layers]).astype(jnp.bfloat16)    # (L, FFN, H)

    # small vector parameters -> one (VEC_ROWS, 128) f32 slab, kept in f32 for VPU math.
    vec = jnp.zeros((VEC_ROWS, OUT_PAD), jnp.float32)

    def put(slab, r, v):
        v = v.reshape(1, -1)
        return slab.at[r:r + 1, 0:v.shape[1]].set(v)

    vec = put(vec, 0, params['emb_ln_g'])
    vec = put(vec, 1, params['emb_ln_b'])
    for l, p in enumerate(layers):
        base = 2 + l * 8
        bqkv = jnp.concatenate([p['bq'] * scale, p['bk'], p['bv']])    # (3H,)
        vec = put(vec, base + 0, bqkv)
        vec = put(vec, base + 1, p['bo'])
        vec = put(vec, base + 2, p['ln1_g'])
        vec = put(vec, base + 3, p['ln1_b'])
        vec = put(vec, base + 4, p['b1'])
        vec = put(vec, base + 5, p['b2'])
        vec = put(vec, base + 6, p['ln2_g'])
        vec = put(vec, base + 7, p['ln2_b'])
    vbase = 2 + NUM_LAYERS * 8
    vec = put(vec, vbase + 0, params['pooler_b'])
    vec = put(vec, vbase + 1, params['reg_b1'])
    reg_b2_pad = jnp.zeros((OUT_PAD,), jnp.float32).at[0].set(params['reg_b2'][0])
    vec = put(vec, vbase + 2, reg_b2_pad)

    # pooler + regressor weights -> one (2H + REG_HIDDEN, 128) bf16 slab.
    head_w = jnp.zeros((2 * H + REG_HIDDEN, OUT_PAD), jnp.float32)
    head_w = head_w.at[0:H, 0:H].set(params['pooler_w'])
    head_w = head_w.at[H:2 * H, 0:REG_HIDDEN].set(params['reg_w1'])
    head_w = head_w.at[2 * H:2 * H + REG_HIDDEN, 0:1].set(params['reg_w2'])
    head_w = head_w.astype(jnp.bfloat16)

    return {
        'word_emb': params['word_emb'],
        'pos_emb': params['pos_emb'],
        'type_emb': params['type_emb'],
        'wqkvo': wqkvo,
        'w1': w1,
        'w2': w2,
        'vec': vec,
        'head_w': head_w,
    }


# ---------------------------------- forward -----------------------------------
def regression_transformer_forward(packed, input_ids, attention_mask):
    Bx, Sx = input_ids.shape
    # Embedding gathers + sum are XLA glue; everything else runs in ONE Pallas kernel.
    word = packed['word_emb'][input_ids]                       # (B, S, H)
    pos = packed['pos_emb'][:Sx][None, :, :]                   # (1, S, H)
    tok = packed['type_emb'][0][None, None, :]                 # token_type_ids == 0
    emb = (word + pos + tok).astype(jnp.float32)

    # Block-diagonal additive mask over flattened (B*S, B*S) positions:
    # -inf on cross-batch blocks, key-padding -inf on masked key positions.
    flat_key = ((1.0 - attention_mask.astype(jnp.float32)) * NEG_INF).reshape(1, Bx * Sx)
    blockdiag = jnp.kron(jnp.eye(Bx, dtype=jnp.float32), jnp.ones((Sx, Sx), jnp.float32))
    add_mask = (1.0 - blockdiag) * NEG_INF + flat_key          # (B*S, B*S)

    out_pad = fused_forward_pallas(emb, add_mask, packed)      # (B, 128) lane-dense slab
    return out_pad[:, 0:1]                                     # (B, 1)


# ------------------------------------ main -------------------------------------
if __name__ == "__main__":
    key = jax.random.PRNGKey(0)
    ids_key, _ = jax.random.split(key)
    input_ids = jax.random.randint(ids_key, (B, S), 0, VOCAB, dtype=jnp.int32)
    attention_mask = jnp.array([[1, 1, 1, 1, 1, 1, 1, 1],
                                [1, 1, 1, 1, 1, 0, 0, 0]], dtype=jnp.int32)

    packed = pack_params(init_params(jax.random.PRNGKey(1)))
    out = regression_transformer_forward(packed, input_ids, attention_mask)
    out = jax.block_until_ready(out)
    assert out.shape == (B, 1) and out.dtype == jnp.float32
    assert bool(jnp.all(jnp.isfinite(out)))
    print("KERNEL_OK")
</pallas_src>

<mosaic_0001>
module attributes {stable_mosaic.version = 11 : i64} {
  func.func @fused_model_kernel(%arg0: memref<2x8x32xf32, #tpu.memory_space<vmem>>, %arg1: memref<16x16xf32, #tpu.memory_space<vmem>>, %arg2: memref<2x32x128xbf16, #tpu.memory_space<vmem>>, %arg3: memref<2x32x128xbf16, #tpu.memory_space<vmem>>, %arg4: memref<2x128x32xbf16, #tpu.memory_space<vmem>>, %arg5: memref<24x128xf32, #tpu.memory_space<vmem>>, %arg6: memref<192x128xbf16, #tpu.memory_space<vmem>>, %arg7: memref<2x128xf32, #tpu.memory_space<vmem>>) attributes {dimension_semantics = [], scalar_prefetch = 0 : i64, scratch_operands = 0 : i64, tpu.core_type = #tpu.core_type<tc>} {
    %c0 = arith.constant 0 : index
    %c0_0 = arith.constant 0 : index
    %0 = vector.load %arg5[%c0, %c0_0] : memref<24x128xf32, #tpu.memory_space<vmem>>, vector<24x128xf32>
    %c0_1 = arith.constant 0 : index
    %c0_2 = arith.constant 0 : index
    %c0_3 = arith.constant 0 : index
    %1 = vector.load %arg0[%c0_1, %c0_2, %c0_3] : memref<2x8x32xf32, #tpu.memory_space<vmem>>, vector<2x8x32xf32>
    %2 = vector.shape_cast %1 : vector<2x8x32xf32> to vector<16x32xf32>
    %3 = vector.extract_strided_slice %0 {offsets = [0, 0], sizes = [1, 32], strides = [1, 1]} : vector<24x128xf32> to vector<1x32xf32>
    %4 = vector.extract_strided_slice %0 {offsets = [1, 0], sizes = [1, 32], strides = [1, 1]} : vector<24x128xf32> to vector<1x32xf32>
    %cst = arith.constant dense<0.000000e+00> : vector<16xf32>
    %5 = vector.multi_reduction <add>, %2, %cst [1] : vector<16x32xf32> to vector<16xf32>
    %6 = vector.shape_cast %5 : vector<16xf32> to vector<16x1xf32>
    %cst_4 = arith.constant 3.200000e+01 : f32
    %7 = vector.broadcast %cst_4 : f32 to vector<16x1xf32>
    %8 = arith.divf %6, %7 : vector<16x1xf32>
    %9 = vector.broadcast %8 : vector<16x1xf32> to vector<16x32xf32>
    %10 = arith.subf %2, %9 : vector<16x32xf32>
    %11 = arith.mulf %10, %10 : vector<16x32xf32>
    %cst_5 = arith.constant dense<0.000000e+00> : vector<16xf32>
    %12 = vector.multi_reduction <add>, %11, %cst_5 [1] : vector<16x32xf32> to vector<16xf32>
    %13 = vector.shape_cast %12 : vector<16xf32> to vector<16x1xf32>
    %cst_6 = arith.constant 3.200000e+01 : f32
    %14 = vector.broadcast %cst_6 : f32 to vector<16x1xf32>
    %15 = arith.divf %13, %14 : vector<16x1xf32>
    %16 = vector.broadcast %8 : vector<16x1xf32> to vector<16x32xf32>
    %17 = arith.subf %2, %16 : vector<16x32xf32>
    %cst_7 = arith.constant 9.99999996E-13 : f32
    %18 = vector.broadcast %cst_7 : f32 to vector<16x1xf32>
    %19 = arith.addf %15, %18 : vector<16x1xf32>
    %20 = math.rsqrt %19 : vector<16x1xf32>
    %21 = vector.broadcast %20 : vector<16x1xf32> to vector<16x32xf32>
    %22 = arith.mulf %17, %21 : vector<16x32xf32>
    %23 = vector.broadcast %3 : vector<1x32xf32> to vector<16x32xf32>
    %24 = arith.mulf %22, %23 : vector<16x32xf32>
    %25 = vector.broadcast %4 : vector<1x32xf32> to vector<16x32xf32>
    %26 = arith.addf %24, %25 : vector<16x32xf32>
    %c0_8 = arith.constant 0 : index
    %c0_9 = arith.constant 0 : index
    %27 = vector.load %arg1[%c0_8, %c0_9] : memref<16x16xf32, #tpu.memory_space<vmem>>, vector<16x16xf32>
    %c0_10 = arith.constant 0 : index
    %c0_11 = arith.constant 0 : index
    %c0_12 = arith.constant 0 : index
    %28 = vector.load %arg2[%c0_10, %c0_11, %c0_12] : memref<2x32x128xbf16, #tpu.memory_space<vmem>>, vector<1x32x128xbf16>
    %29 = vector.shape_cast %28 : vector<1x32x128xbf16> to vector<32x128xbf16>
    %30 = vector.extract_strided_slice %29 {offsets = [0, 0], sizes = [32, 96], strides = [1, 1]} : vector<32x128xbf16> to vector<32x96xbf16>
    %31 = vector.extract_strided_slice %29 {offsets = [0, 96], sizes = [32, 32], strides = [1, 1]} : vector<32x128xbf16> to vector<32x32xbf16>
    %32 = arith.truncf %26 : vector<16x32xf32> to vector<16x32xbf16>
    %cst_13 = arith.constant dense<0.000000e+00> : vector<16x96xf32>
    %33 = tpu.matmul %32, %30, %cst_13 {dimension_numbers = #tpu.dot_dimension_numbers<[1], [0], [0], [1], [0, 0, 1, 1], [], []>} : vector<16x32xbf16>, vector<32x96xbf16>, vector<16x96xf32> -> vector<16x96xf32>
    %34 = vector.extract_strided_slice %0 {offsets = [2, 0], sizes = [1, 96], strides = [1, 1]} : vector<24x128xf32> to vector<1x96xf32>
    %35 = vector.broadcast %34 : vector<1x96xf32> to vector<16x96xf32>
    %36 = arith.addf %33, %35 : vector<16x96xf32>
    %37 = vector.extract_strided_slice %36 {offsets = [0, 0], sizes = [16, 8], strides = [1, 1]} : vector<16x96xf32> to vector<16x8xf32>
    %38 = vector.extract_strided_slice %36 {offsets = [0, 32], sizes = [16, 8], strides = [1, 1]} : vector<16x96xf32> to vector<16x8xf32>
    %39 = vector.extract_strided_slice %36 {offsets = [0, 64], sizes = [16, 8], strides = [1, 1]} : vector<16x96xf32> to vector<16x8xf32>
    %40 = arith.truncf %37 : vector<16x8xf32> to vector<16x8xbf16>
    %41 = arith.truncf %38 : vector<16x8xf32> to vector<16x8xbf16>
    %cst_14 = arith.constant dense<0.000000e+00> : vector<16x16xf32>
    %42 = tpu.matmul %40, %41, %cst_14 {dimension_numbers = #tpu.dot_dimension_numbers<[1], [1], [0], [0], [0, 0, 1, 0], [], []>} : vector<16x8xbf16>, vector<16x8xbf16>, vector<16x16xf32> -> vector<16x16xf32>
    %43 = arith.addf %42, %27 : vector<16x16xf32>
    %cst_15 = arith.constant dense<0xFF800000> : vector<16xf32>
    %44 = vector.multi_reduction <maximumf>, %43, %cst_15 [1] : vector<16x16xf32> to vector<16xf32>
    %45 = vector.shape_cast %44 : vector<16xf32> to vector<16x1xf32>
    %46 = vector.broadcast %45 : vector<16x1xf32> to vector<16x16xf32>
    %47 = arith.subf %43, %46 : vector<16x16xf32>
    %48 = math.exp %47 : vector<16x16xf32>
    %cst_16 = arith.constant dense<0.000000e+00> : vector<16xf32>
    %49 = vector.multi_reduction <add>, %48, %cst_16 [1] : vector<16x16xf32> to vector<16xf32>
    %50 = vector.shape_cast %49 : vector<16xf32> to vector<16x1xf32>
    %51 = tpu.reciprocal %50 {approx = true} : vector<16x1xf32> -> vector<16x1xf32>
    %52 = vector.broadcast %51 : vector<16x1xf32> to vector<16x16xf32>
    %53 = arith.mulf %48, %52 : vector<16x16xf32>
    %54 = arith.truncf %53 : vector<16x16xf32> to vector<16x16xbf16>
    %55 = arith.truncf %39 : vector<16x8xf32> to vector<16x8xbf16>
    %cst_17 = arith.constant dense<0.000000e+00> : vector<16x8xf32>
    %56 = tpu.matmul %54, %55, %cst_17 {dimension_numbers = #tpu.dot_dimension_numbers<[1], [0], [0], [1], [0, 0, 1, 1], [], []>} : vector<16x16xbf16>, vector<16x8xbf16>, vector<16x8xf32> -> vector<16x8xf32>
    %57 = vector.extract_strided_slice %36 {offsets = [0, 8], sizes = [16, 8], strides = [1, 1]} : vector<16x96xf32> to vector<16x8xf32>
    %58 = vector.extract_strided_slice %36 {offsets = [0, 40], sizes = [16, 8], strides = [1, 1]} : vector<16x96xf32> to vector<16x8xf32>
    %59 = vector.extract_strided_slice %36 {offsets = [0, 72], sizes = [16, 8], strides = [1, 1]} : vector<16x96xf32> to vector<16x8xf32>
    %60 = arith.truncf %57 : vector<16x8xf32> to vector<16x8xbf16>
    %61 = arith.truncf %58 : vector<16x8xf32> to vector<16x8xbf16>
    %cst_18 = arith.constant dense<0.000000e+00> : vector<16x16xf32>
    %62 = tpu.matmul %60, %61, %cst_18 {dimension_numbers = #tpu.dot_dimension_numbers<[1], [1], [0], [0], [0, 0, 1, 0], [], []>} : vector<16x8xbf16>, vector<16x8xbf16>, vector<16x16xf32> -> vector<16x16xf32>
    %63 = arith.addf %62, %27 : vector<16x16xf32>
    %cst_19 = arith.constant dense<0xFF800000> : vector<16xf32>
    %64 = vector.multi_reduction <maximumf>, %63, %cst_19 [1] : vector<16x16xf32> to vector<16xf32>
    %65 = vector.shape_cast %64 : vector<16xf32> to vector<16x1xf32>
    %66 = vector.broadcast %65 : vector<16x1xf32> to vector<16x16xf32>
    %67 = arith.subf %63, %66 : vector<16x16xf32>
    %68 = math.exp %67 : vector<16x16xf32>
    %cst_20 = arith.constant dense<0.000000e+00> : vector<16xf32>
    %69 = vector.multi_reduction <add>, %68, %cst_20 [1] : vector<16x16xf32> to vector<16xf32>
    %70 = vector.shape_cast %69 : vector<16xf32> to vector<16x1xf32>
    %71 = tpu.reciprocal %70 {approx = true} : vector<16x1xf32> -> vector<16x1xf32>
    %72 = vector.broadcast %71 : vector<16x1xf32> to vector<16x16xf32>
    %73 = arith.mulf %68, %72 : vector<16x16xf32>
    %74 = arith.truncf %73 : vector<16x16xf32> to vector<16x16xbf16>
    %75 = arith.truncf %59 : vector<16x8xf32> to vector<16x8xbf16>
    %cst_21 = arith.constant dense<0.000000e+00> : vector<16x8xf32>
    %76 = tpu.matmul %74, %75, %cst_21 {dimension_numbers = #tpu.dot_dimension_numbers<[1], [0], [0], [1], [0, 0, 1, 1], [], []>} : vector<16x16xbf16>, vector<16x8xbf16>, vector<16x8xf32> -> vector<16x8xf32>
    %77 = vector.extract_strided_slice %36 {offsets = [0, 16], sizes = [16, 8], strides = [1, 1]} : vector<16x96xf32> to vector<16x8xf32>
    %78 = vector.extract_strided_slice %36 {offsets = [0, 48], sizes = [16, 8], strides = [1, 1]} : vector<16x96xf32> to vector<16x8xf32>
    %79 = vector.extract_strided_slice %36 {offsets = [0, 80], sizes = [16, 8], strides = [1, 1]} : vector<16x96xf32> to vector<16x8xf32>
    %80 = arith.truncf %77 : vector<16x8xf32> to vector<16x8xbf16>
    %81 = arith.truncf %78 : vector<16x8xf32> to vector<16x8xbf16>
    %cst_22 = arith.constant dense<0.000000e+00> : vector<16x16xf32>
    %82 = tpu.matmul %80, %81, %cst_22 {dimension_numbers = #tpu.dot_dimension_numbers<[1], [1], [0], [0], [0, 0, 1, 0], [], []>} : vector<16x8xbf16>, vector<16x8xbf16>, vector<16x16xf32> -> vector<16x16xf32>
    %83 = arith.addf %82, %27 : vector<16x16xf32>
    %cst_23 = arith.constant dense<0xFF800000> : vector<16xf32>
    %84 = vector.multi_reduction <maximumf>, %83, %cst_23 [1] : vector<16x16xf32> to vector<16xf32>
    %85 = vector.shape_cast %84 : vector<16xf32> to vector<16x1xf32>
    %86 = vector.broadcast %85 : vector<16x1xf32> to vector<16x16xf32>
    %87 = arith.subf %83, %86 : vector<16x16xf32>
    %88 = math.exp %87 : vector<16x16xf32>
    %cst_24 = arith.constant dense<0.000000e+00> : vector<16xf32>
    %89 = vector.multi_reduction <add>, %88, %cst_24 [1] : vector<16x16xf32> to vector<16xf32>
    %90 = vector.shape_cast %89 : vector<16xf32> to vector<16x1xf32>
    %91 = tpu.reciprocal %90 {approx = true} : vector<16x1xf32> -> vector<16x1xf32>
    %92 = vector.broadcast %91 : vector<16x1xf32> to vector<16x16xf32>
    %93 = arith.mulf %88, %92 : vector<16x16xf32>
    %94 = arith.truncf %93 : vector<16x16xf32> to vector<16x16xbf16>
    %95 = arith.truncf %79 : vector<16x8xf32> to vector<16x8xbf16>
    %cst_25 = arith.constant dense<0.000000e+00> : vector<16x8xf32>
    %96 = tpu.matmul %94, %95, %cst_25 {dimension_numbers = #tpu.dot_dimension_numbers<[1], [0], [0], [1], [0, 0, 1, 1], [], []>} : vector<16x16xbf16>, vector<16x8xbf16>, vector<16x8xf32> -> vector<16x8xf32>
    %97 = vector.extract_strided_slice %36 {offsets = [0, 24], sizes = [16, 8], strides = [1, 1]} : vector<16x96xf32> to vector<16x8xf32>
    %98 = vector.extract_strided_slice %36 {offsets = [0, 56], sizes = [16, 8], strides = [1, 1]} : vector<16x96xf32> to vector<16x8xf32>
    %99 = vector.extract_strided_slice %36 {offsets = [0, 88], sizes = [16, 8], strides = [1, 1]} : vector<16x96xf32> to vector<16x8xf32>
    %100 = arith.truncf %97 : vector<16x8xf32> to vector<16x8xbf16>
    %101 = arith.truncf %98 : vector<16x8xf32> to vector<16x8xbf16>
    %cst_26 = arith.constant dense<0.000000e+00> : vector<16x16xf32>
    %102 = tpu.matmul %100, %101, %cst_26 {dimension_numbers = #tpu.dot_dimension_numbers<[1], [1], [0], [0], [0, 0, 1, 0], [], []>} : vector<16x8xbf16>, vector<16x8xbf16>, vector<16x16xf32> -> vector<16x16xf32>
    %103 = arith.addf %102, %27 : vector<16x16xf32>
    %cst_27 = arith.constant dense<0xFF800000> : vector<16xf32>
    %104 = vector.multi_reduction <maximumf>, %103, %cst_27 [1] : vector<16x16xf32> to vector<16xf32>
    %105 = vector.shape_cast %104 : vector<16xf32> to vector<16x1xf32>
    %106 = vector.broadcast %105 : vector<16x1xf32> to vector<16x16xf32>
    %107 = arith.subf %103, %106 : vector<16x16xf32>
    %108 = math.exp %107 : vector<16x16xf32>
    %cst_28 = arith.constant dense<0.000000e+00> : vector<16xf32>
    %109 = vector.multi_reduction <add>, %108, %cst_28 [1] : vector<16x16xf32> to vector<16xf32>
    %110 = vector.shape_cast %109 : vector<16xf32> to vector<16x1xf32>
    %111 = tpu.reciprocal %110 {approx = true} : vector<16x1xf32> -> vector<16x1xf32>
    %112 = vector.broadcast %111 : vector<16x1xf32> to vector<16x16xf32>
    %113 = arith.mulf %108, %112 : vector<16x16xf32>
    %114 = arith.truncf %113 : vector<16x16xf32> to vector<16x16xbf16>
    %115 = arith.truncf %99 : vector<16x8xf32> to vector<16x8xbf16>
    %cst_29 = arith.constant dense<0.000000e+00> : vector<16x8xf32>
    %116 = tpu.matmul %114, %115, %cst_29 {dimension_numbers = #tpu.dot_dimension_numbers<[1], [0], [0], [1], [0, 0, 1, 1], [], []>} : vector<16x16xbf16>, vector<16x8xbf16>, vector<16x8xf32> -> vector<16x8xf32>
    %117 = tpu.concatenate %56, %76, %96, %116 in 1 : vector<16x8xf32>, vector<16x8xf32>, vector<16x8xf32>, vector<16x8xf32> -> vector<16x32xf32>
    %118 = arith.truncf %117 : vector<16x32xf32> to vector<16x32xbf16>
    %cst_30 = arith.constant dense<0.000000e+00> : vector<16x32xf32>
    %119 = tpu.matmul %118, %31, %cst_30 {dimension_numbers = #tpu.dot_dimension_numbers<[1], [0], [0], [1], [0, 0, 1, 1], [], []>} : vector<16x32xbf16>, vector<32x32xbf16>, vector<16x32xf32> -> vector<16x32xf32>
    %120 = vector.extract_strided_slice %0 {offsets = [3, 0], sizes = [1, 32], strides = [1, 1]} : vector<24x128xf32> to vector<1x32xf32>
    %121 = vector.broadcast %120 : vector<1x32xf32> to vector<16x32xf32>
    %122 = arith.addf %119, %121 : vector<16x32xf32>
    %123 = arith.addf %26, %122 : vector<16x32xf32>
    %124 = vector.extract_strided_slice %0 {offsets = [4, 0], sizes = [1, 32], strides = [1, 1]} : vector<24x128xf32> to vector<1x32xf32>
    %125 = vector.extract_strided_slice %0 {offsets = [5, 0], sizes = [1, 32], strides = [1, 1]} : vector<24x128xf32> to vector<1x32xf32>
    %cst_31 = arith.constant dense<0.000000e+00> : vector<16xf32>
    %126 = vector.multi_reduction <add>, %123, %cst_31 [1] : vector<16x32xf32> to vector<16xf32>
    %127 = vector.shape_cast %126 : vector<16xf32> to vector<16x1xf32>
    %cst_32 = arith.constant 3.200000e+01 : f32
    %128 = vector.broadcast %cst_32 : f32 to vector<16x1xf32>
    %129 = arith.divf %127, %128 : vector<16x1xf32>
    %130 = vector.broadcast %129 : vector<16x1xf32> to vector<16x32xf32>
    %131 = arith.subf %123, %130 : vector<16x32xf32>
    %132 = arith.mulf %131, %131 : vector<16x32xf32>
    %cst_33 = arith.constant dense<0.000000e+00> : vector<16xf32>
    %133 = vector.multi_reduction <add>, %132, %cst_33 [1] : vector<16x32xf32> to vector<16xf32>
    %134 = vector.shape_cast %133 : vector<16xf32> to vector<16x1xf32>
    %cst_34 = arith.constant 3.200000e+01 : f32
    %135 = vector.broadcast %cst_34 : f32 to vector<16x1xf32>
    %136 = arith.divf %134, %135 : vector<16x1xf32>
    %137 = vector.broadcast %129 : vector<16x1xf32> to vector<16x32xf32>
    %138 = arith.subf %123, %137 : vector<16x32xf32>
    %cst_35 = arith.constant 9.99999996E-13 : f32
    %139 = vector.broadcast %cst_35 : f32 to vector<16x1xf32>
    %140 = arith.addf %136, %139 : vector<16x1xf32>
    %141 = math.rsqrt %140 : vector<16x1xf32>
    %142 = vector.broadcast %141 : vector<16x1xf32> to vector<16x32xf32>
    %143 = arith.mulf %138, %142 : vector<16x32xf32>
    %144 = vector.broadcast %124 : vector<1x32xf32> to vector<16x32xf32>
    %145 = arith.mulf %143, %144 : vector<16x32xf32>
    %146 = vector.broadcast %125 : vector<1x32xf32> to vector<16x32xf32>
    %147 = arith.addf %145, %146 : vector<16x32xf32>
    %148 = arith.truncf %147 : vector<16x32xf32> to vector<16x32xbf16>
    %c0_36 = arith.constant 0 : index
    %c0_37 = arith.constant 0 : index
    %c0_38 = arith.constant 0 : index
    %149 = vector.load %arg3[%c0_36, %c0_37, %c0_38] : memref<2x32x128xbf16, #tpu.memory_space<vmem>>, vector<1x32x128xbf16>
    %150 = vector.shape_cast %149 : vector<1x32x128xbf16> to vector<32x128xbf16>
    %cst_39 = arith.constant dense<0.000000e+00> : vector<16x128xf32>
    %151 = tpu.matmul %148, %150, %cst_39 {dimension_numbers = #tpu.dot_dimension_numbers<[1], [0], [0], [1], [0, 0, 1, 1], [], []>} : vector<16x32xbf16>, vector<32x128xbf16>, vector<16x128xf32> -> vector<16x128xf32>
    %152 = vector.extract_strided_slice %0 {offsets = [6, 0], sizes = [1, 128], strides = [1, 1]} : vector<24x128xf32> to vector<1x128xf32>
    %153 = vector.broadcast %152 : vector<1x128xf32> to vector<16x128xf32>
    %154 = arith.addf %151, %153 : vector<16x128xf32>
    %155 = arith.mulf %154, %154 : vector<16x128xf32>
    %156 = arith.mulf %154, %155 : vector<16x128xf32>
    %cst_40 = arith.constant 4.471500e-02 : f32
    %157 = vector.broadcast %cst_40 : f32 to vector<16x128xf32>
    %158 = arith.mulf %157, %156 : vector<16x128xf32>
    %159 = arith.addf %154, %158 : vector<16x128xf32>
    %cst_41 = arith.constant 0.797884583 : f32
    %160 = vector.broadcast %cst_41 : f32 to vector<16x128xf32>
    %161 = arith.mulf %160, %159 : vector<16x128xf32>
    %162 = math.tanh %161 : vector<16x128xf32>
    %cst_42 = arith.constant 1.000000e+00 : f32
    %163 = vector.broadcast %cst_42 : f32 to vector<16x128xf32>
    %164 = arith.addf %163, %162 : vector<16x128xf32>
    %cst_43 = arith.constant 5.000000e-01 : f32
    %165 = vector.broadcast %cst_43 : f32 to vector<16x128xf32>
    %166 = arith.mulf %165, %164 : vector<16x128xf32>
    %167 = arith.mulf %154, %166 : vector<16x128xf32>
    %168 = arith.truncf %167 : vector<16x128xf32> to vector<16x128xbf16>
    %c0_44 = arith.constant 0 : index
    %c0_45 = arith.constant 0 : index
    %c0_46 = arith.constant 0 : index
    %169 = vector.load %arg4[%c0_44, %c0_45, %c0_46] : memref<2x128x32xbf16, #tpu.memory_space<vmem>>, vector<1x128x32xbf16>
    %170 = vector.shape_cast %169 : vector<1x128x32xbf16> to vector<128x32xbf16>
    %cst_47 = arith.constant dense<0.000000e+00> : vector<16x32xf32>
    %171 = tpu.matmul %168, %170, %cst_47 {dimension_numbers = #tpu.dot_dimension_numbers<[1], [0], [0], [1], [0, 0, 1, 1], [], []>} : vector<16x128xbf16>, vector<128x32xbf16>, vector<16x32xf32> -> vector<16x32xf32>
    %172 = vector.extract_strided_slice %0 {offsets = [7, 0], sizes = [1, 32], strides = [1, 1]} : vector<24x128xf32> to vector<1x32xf32>
    %173 = vector.broadcast %172 : vector<1x32xf32> to vector<16x32xf32>
    %174 = arith.addf %171, %173 : vector<16x32xf32>
    %175 = arith.addf %147, %174 : vector<16x32xf32>
    %176 = vector.extract_strided_slice %0 {offsets = [8, 0], sizes = [1, 32], strides = [1, 1]} : vector<24x128xf32> to vector<1x32xf32>
    %177 = vector.extract_strided_slice %0 {offsets = [9, 0], sizes = [1, 32], strides = [1, 1]} : vector<24x128xf32> to vector<1x32xf32>
    %cst_48 = arith.constant dense<0.000000e+00> : vector<16xf32>
    %178 = vector.multi_reduction <add>, %175, %cst_48 [1] : vector<16x32xf32> to vector<16xf32>
    %179 = vector.shape_cast %178 : vector<16xf32> to vector<16x1xf32>
    %cst_49 = arith.constant 3.200000e+01 : f32
    %180 = vector.broadcast %cst_49 : f32 to vector<16x1xf32>
    %181 = arith.divf %179, %180 : vector<16x1xf32>
    %182 = vector.broadcast %181 : vector<16x1xf32> to vector<16x32xf32>
    %183 = arith.subf %175, %182 : vector<16x32xf32>
    %184 = arith.mulf %183, %183 : vector<16x32xf32>
    %cst_50 = arith.constant dense<0.000000e+00> : vector<16xf32>
    %185 = vector.multi_reduction <add>, %184, %cst_50 [1] : vector<16x32xf32> to vector<16xf32>
    %186 = vector.shape_cast %185 : vector<16xf32> to vector<16x1xf32>
    %cst_51 = arith.constant 3.200000e+01 : f32
    %187 = vector.broadcast %cst_51 : f32 to vector<16x1xf32>
    %188 = arith.divf %186, %187 : vector<16x1xf32>
    %189 = vector.broadcast %181 : vector<16x1xf32> to vector<16x32xf32>
    %190 = arith.subf %175, %189 : vector<16x32xf32>
    %cst_52 = arith.constant 9.99999996E-13 : f32
    %191 = vector.broadcast %cst_52 : f32 to vector<16x1xf32>
    %192 = arith.addf %188, %191 : vector<16x1xf32>
    %193 = math.rsqrt %192 : vector<16x1xf32>
    %194 = vector.broadcast %193 : vector<16x1xf32> to vector<16x32xf32>
    %195 = arith.mulf %190, %194 : vector<16x32xf32>
    %196 = vector.broadcast %176 : vector<1x32xf32> to vector<16x32xf32>
    %197 = arith.mulf %195, %196 : vector<16x32xf32>
    %198 = vector.broadcast %177 : vector<1x32xf32> to vector<16x32xf32>
    %199 = arith.addf %197, %198 : vector<16x32xf32>
    %c1 = arith.constant 1 : index
    %c0_53 = arith.constant 0 : index
    %c0_54 = arith.constant 0 : index
    %200 = vector.load %arg2[%c1, %c0_53, %c0_54] : memref<2x32x128xbf16, #tpu.memory_space<vmem>>, vector<1x32x128xbf16>
    %201 = vector.shape_cast %200 : vector<1x32x128xbf16> to vector<32x128xbf16>
    %202 = vector.extract_strided_slice %201 {offsets = [0, 0], sizes = [32, 96], strides = [1, 1]} : vector<32x128xbf16> to vector<32x96xbf16>
    %203 = vector.extract_strided_slice %201 {offsets = [0, 96], sizes = [32, 32], strides = [1, 1]} : vector<32x128xbf16> to vector<32x32xbf16>
    %204 = arith.truncf %199 : vector<16x32xf32> to vector<16x32xbf16>
    %cst_55 = arith.constant dense<0.000000e+00> : vector<16x96xf32>
    %205 = tpu.matmul %204, %202, %cst_55 {dimension_numbers = #tpu.dot_dimension_numbers<[1], [0], [0], [1], [0, 0, 1, 1], [], []>} : vector<16x32xbf16>, vector<32x96xbf16>, vector<16x96xf32> -> vector<16x96xf32>
    %206 = vector.extract_strided_slice %0 {offsets = [10, 0], sizes = [1, 96], strides = [1, 1]} : vector<24x128xf32> to vector<1x96xf32>
    %207 = vector.broadcast %206 : vector<1x96xf32> to vector<16x96xf32>
    %208 = arith.addf %205, %207 : vector<16x96xf32>
    %209 = vector.extract_strided_slice %208 {offsets = [0, 0], sizes = [16, 8], strides = [1, 1]} : vector<16x96xf32> to vector<16x8xf32>
    %210 = vector.extract_strided_slice %208 {offsets = [0, 32], sizes = [16, 8], strides = [1, 1]} : vector<16x96xf32> to vector<16x8xf32>
    %211 = vector.extract_strided_slice %208 {offsets = [0, 64], sizes = [16, 8], strides = [1, 1]} : vector<16x96xf32> to vector<16x8xf32>
    %212 = arith.truncf %209 : vector<16x8xf32> to vector<16x8xbf16>
    %213 = arith.truncf %210 : vector<16x8xf32> to vector<16x8xbf16>
    %cst_56 = arith.constant dense<0.000000e+00> : vector<16x16xf32>
    %214 = tpu.matmul %212, %213, %cst_56 {dimension_numbers = #tpu.dot_dimension_numbers<[1], [1], [0], [0], [0, 0, 1, 0], [], []>} : vector<16x8xbf16>, vector<16x8xbf16>, vector<16x16xf32> -> vector<16x16xf32>
    %215 = arith.addf %214, %27 : vector<16x16xf32>
    %cst_57 = arith.constant dense<0xFF800000> : vector<16xf32>
    %216 = vector.multi_reduction <maximumf>, %215, %cst_57 [1] : vector<16x16xf32> to vector<16xf32>
    %217 = vector.shape_cast %216 : vector<16xf32> to vector<16x1xf32>
    %218 = vector.broadcast %217 : vector<16x1xf32> to vector<16x16xf32>
    %219 = arith.subf %215, %218 : vector<16x16xf32>
    %220 = math.exp %219 : vector<16x16xf32>
    %cst_58 = arith.constant dense<0.000000e+00> : vector<16xf32>
    %221 = vector.multi_reduction <add>, %220, %cst_58 [1] : vector<16x16xf32> to vector<16xf32>
    %222 = vector.shape_cast %221 : vector<16xf32> to vector<16x1xf32>
    %223 = tpu.reciprocal %222 {approx = true} : vector<16x1xf32> -> vector<16x1xf32>
    %224 = vector.broadcast %223 : vector<16x1xf32> to vector<16x16xf32>
    %225 = arith.mulf %220, %224 : vector<16x16xf32>
    %226 = arith.truncf %225 : vector<16x16xf32> to vector<16x16xbf16>
    %227 = arith.truncf %211 : vector<16x8xf32> to vector<16x8xbf16>
    %cst_59 = arith.constant dense<0.000000e+00> : vector<16x8xf32>
    %228 = tpu.matmul %226, %227, %cst_59 {dimension_numbers = #tpu.dot_dimension_numbers<[1], [0], [0], [1], [0, 0, 1, 1], [], []>} : vector<16x16xbf16>, vector<16x8xbf16>, vector<16x8xf32> -> vector<16x8xf32>
    %229 = vector.extract_strided_slice %208 {offsets = [0, 8], sizes = [16, 8], strides = [1, 1]} : vector<16x96xf32> to vector<16x8xf32>
    %230 = vector.extract_strided_slice %208 {offsets = [0, 40], sizes = [16, 8], strides = [1, 1]} : vector<16x96xf32> to vector<16x8xf32>
    %231 = vector.extract_strided_slice %208 {offsets = [0, 72], sizes = [16, 8], strides = [1, 1]} : vector<16x96xf32> to vector<16x8xf32>
    %232 = arith.truncf %229 : vector<16x8xf32> to vector<16x8xbf16>
    %233 = arith.truncf %230 : vector<16x8xf32> to vector<16x8xbf16>
    %cst_60 = arith.constant dense<0.000000e+00> : vector<16x16xf32>
    %234 = tpu.matmul %232, %233, %cst_60 {dimension_numbers = #tpu.dot_dimension_numbers<[1], [1], [0], [0], [0, 0, 1, 0], [], []>} : vector<16x8xbf16>, vector<16x8xbf16>, vector<16x16xf32> -> vector<16x16xf32>
    %235 = arith.addf %234, %27 : vector<16x16xf32>
    %cst_61 = arith.constant dense<0xFF800000> : vector<16xf32>
    %236 = vector.multi_reduction <maximumf>, %235, %cst_61 [1] : vector<16x16xf32> to vector<16xf32>
    %237 = vector.shape_cast %236 : vector<16xf32> to vector<16x1xf32>
    %238 = vector.broadcast %237 : vector<16x1xf32> to vector<16x16xf32>
    %239 = arith.subf %235, %238 : vector<16x16xf32>
    %240 = math.exp %239 : vector<16x16xf32>
    %cst_62 = arith.constant dense<0.000000e+00> : vector<16xf32>
    %241 = vector.multi_reduction <add>, %240, %cst_62 [1] : vector<16x16xf32> to vector<16xf32>
    %242 = vector.shape_cast %241 : vector<16xf32> to vector<16x1xf32>
    %243 = tpu.reciprocal %242 {approx = true} : vector<16x1xf32> -> vector<16x1xf32>
    %244 = vector.broadcast %243 : vector<16x1xf32> to vector<16x16xf32>
    %245 = arith.mulf %240, %244 : vector<16x16xf32>
    %246 = arith.truncf %245 : vector<16x16xf32> to vector<16x16xbf16>
    %247 = arith.truncf %231 : vector<16x8xf32> to vector<16x8xbf16>
    %cst_63 = arith.constant dense<0.000000e+00> : vector<16x8xf32>
    %248 = tpu.matmul %246, %247, %cst_63 {dimension_numbers = #tpu.dot_dimension_numbers<[1], [0], [0], [1], [0, 0, 1, 1], [], []>} : vector<16x16xbf16>, vector<16x8xbf16>, vector<16x8xf32> -> vector<16x8xf32>
    %249 = vector.extract_strided_slice %208 {offsets = [0, 16], sizes = [16, 8], strides = [1, 1]} : vector<16x96xf32> to vector<16x8xf32>
    %250 = vector.extract_strided_slice %208 {offsets = [0, 48], sizes = [16, 8], strides = [1, 1]} : vector<16x96xf32> to vector<16x8xf32>
    %251 = vector.extract_strided_slice %208 {offsets = [0, 80], sizes = [16, 8], strides = [1, 1]} : vector<16x96xf32> to vector<16x8xf32>
    %252 = arith.truncf %249 : vector<16x8xf32> to vector<16x8xbf16>
    %253 = arith.truncf %250 : vector<16x8xf32> to vector<16x8xbf16>
    %cst_64 = arith.constant dense<0.000000e+00> : vector<16x16xf32>
    %254 = tpu.matmul %252, %253, %cst_64 {dimension_numbers = #tpu.dot_dimension_numbers<[1], [1], [0], [0], [0, 0, 1, 0], [], []>} : vector<16x8xbf16>, vector<16x8xbf16>, vector<16x16xf32> -> vector<16x16xf32>
    %255 = arith.addf %254, %27 : vector<16x16xf32>
    %cst_65 = arith.constant dense<0xFF800000> : vector<16xf32>
    %256 = vector.multi_reduction <maximumf>, %255, %cst_65 [1] : vector<16x16xf32> to vector<16xf32>
    %257 = vector.shape_cast %256 : vector<16xf32> to vector<16x1xf32>
    %258 = vector.broadcast %257 : vector<16x1xf32> to vector<16x16xf32>
    %259 = arith.subf %255, %258 : vector<16x16xf32>
    %260 = math.exp %259 : vector<16x16xf32>
    %cst_66 = arith.constant dense<0.000000e+00> : vector<16xf32>
    %261 = vector.multi_reduction <add>, %260, %cst_66 [1] : vector<16x16xf32> to vector<16xf32>
    %262 = vector.shape_cast %261 : vector<16xf32> to vector<16x1xf32>
    %263 = tpu.reciprocal %262 {approx = true} : vector<16x1xf32> -> vector<16x1xf32>
    %264 = vector.broadcast %263 : vector<16x1xf32> to vector<16x16xf32>
    %265 = arith.mulf %260, %264 : vector<16x16xf32>
    %266 = arith.truncf %265 : vector<16x16xf32> to vector<16x16xbf16>
    %267 = arith.truncf %251 : vector<16x8xf32> to vector<16x8xbf16>
    %cst_67 = arith.constant dense<0.000000e+00> : vector<16x8xf32>
    %268 = tpu.matmul %266, %267, %cst_67 {dimension_numbers = #tpu.dot_dimension_numbers<[1], [0], [0], [1], [0, 0, 1, 1], [], []>} : vector<16x16xbf16>, vector<16x8xbf16>, vector<16x8xf32> -> vector<16x8xf32>
    %269 = vector.extract_strided_slice %208 {offsets = [0, 24], sizes = [16, 8], strides = [1, 1]} : vector<16x96xf32> to vector<16x8xf32>
    %270 = vector.extract_strided_slice %208 {offsets = [0, 56], sizes = [16, 8], strides = [1, 1]} : vector<16x96xf32> to vector<16x8xf32>
    %271 = vector.extract_strided_slice %208 {offsets = [0, 88], sizes = [16, 8], strides = [1, 1]} : vector<16x96xf32> to vector<16x8xf32>
    %272 = arith.truncf %269 : vector<16x8xf32> to vector<16x8xbf16>
    %273 = arith.truncf %270 : vector<16x8xf32> to vector<16x8xbf16>
    %cst_68 = arith.constant dense<0.000000e+00> : vector<16x16xf32>
    %274 = tpu.matmul %272, %273, %cst_68 {dimension_numbers = #tpu.dot_dimension_numbers<[1], [1], [0], [0], [0, 0, 1, 0], [], []>} : vector<16x8xbf16>, vector<16x8xbf16>, vector<16x16xf32> -> vector<16x16xf32>
    %275 = arith.addf %274, %27 : vector<16x16xf32>
    %cst_69 = arith.constant dense<0xFF800000> : vector<16xf32>
    %276 = vector.multi_reduction <maximumf>, %275, %cst_69 [1] : vector<16x16xf32> to vector<16xf32>
    %277 = vector.shape_cast %276 : vector<16xf32> to vector<16x1xf32>
    %278 = vector.broadcast %277 : vector<16x1xf32> to vector<16x16xf32>
    %279 = arith.subf %275, %278 : vector<16x16xf32>
    %280 = math.exp %279 : vector<16x16xf32>
    %cst_70 = arith.constant dense<0.000000e+00> : vector<16xf32>
    %281 = vector.multi_reduction <add>, %280, %cst_70 [1] : vector<16x16xf32> to vector<16xf32>
    %282 = vector.shape_cast %281 : vector<16xf32> to vector<16x1xf32>
    %283 = tpu.reciprocal %282 {approx = true} : vector<16x1xf32> -> vector<16x1xf32>
    %284 = vector.broadcast %283 : vector<16x1xf32> to vector<16x16xf32>
    %285 = arith.mulf %280, %284 : vector<16x16xf32>
    %286 = arith.truncf %285 : vector<16x16xf32> to vector<16x16xbf16>
    %287 = arith.truncf %271 : vector<16x8xf32> to vector<16x8xbf16>
    %cst_71 = arith.constant dense<0.000000e+00> : vector<16x8xf32>
    %288 = tpu.matmul %286, %287, %cst_71 {dimension_numbers = #tpu.dot_dimension_numbers<[1], [0], [0], [1], [0, 0, 1, 1], [], []>} : vector<16x16xbf16>, vector<16x8xbf16>, vector<16x8xf32> -> vector<16x8xf32>
    %289 = tpu.concatenate %228, %248, %268, %288 in 1 : vector<16x8xf32>, vector<16x8xf32>, vector<16x8xf32>, vector<16x8xf32> -> vector<16x32xf32>
    %290 = arith.truncf %289 : vector<16x32xf32> to vector<16x32xbf16>
    %cst_72 = arith.constant dense<0.000000e+00> : vector<16x32xf32>
    %291 = tpu.matmul %290, %203, %cst_72 {dimension_numbers = #tpu.dot_dimension_numbers<[1], [0], [0], [1], [0, 0, 1, 1], [], []>} : vector<16x32xbf16>, vector<32x32xbf16>, vector<16x32xf32> -> vector<16x32xf32>
    %292 = vector.extract_strided_slice %0 {offsets = [11, 0], sizes = [1, 32], strides = [1, 1]} : vector<24x128xf32> to vector<1x32xf32>
    %293 = vector.broadcast %292 : vector<1x32xf32> to vector<16x32xf32>
    %294 = arith.addf %291, %293 : vector<16x32xf32>
    %295 = arith.addf %199, %294 : vector<16x32xf32>
    %296 = vector.extract_strided_slice %0 {offsets = [12, 0], sizes = [1, 32], strides = [1, 1]} : vector<24x128xf32> to vector<1x32xf32>
    %297 = vector.extract_strided_slice %0 {offsets = [13, 0], sizes = [1, 32], strides = [1, 1]} : vector<24x128xf32> to vector<1x32xf32>
    %cst_73 = arith.constant dense<0.000000e+00> : vector<16xf32>
    %298 = vector.multi_reduction <add>, %295, %cst_73 [1] : vector<16x32xf32> to vector<16xf32>
    %299 = vector.shape_cast %298 : vector<16xf32> to vector<16x1xf32>
    %cst_74 = arith.constant 3.200000e+01 : f32
    %300 = vector.broadcast %cst_74 : f32 to vector<16x1xf32>
    %301 = arith.divf %299, %300 : vector<16x1xf32>
    %302 = vector.broadcast %301 : vector<16x1xf32> to vector<16x32xf32>
    %303 = arith.subf %295, %302 : vector<16x32xf32>
    %304 = arith.mulf %303, %303 : vector<16x32xf32>
    %cst_75 = arith.constant dense<0.000000e+00> : vector<16xf32>
    %305 = vector.multi_reduction <add>, %304, %cst_75 [1] : vector<16x32xf32> to vector<16xf32>
    %306 = vector.shape_cast %305 : vector<16xf32> to vector<16x1xf32>
    %cst_76 = arith.constant 3.200000e+01 : f32
    %307 = vector.broadcast %cst_76 : f32 to vector<16x1xf32>
    %308 = arith.divf %306, %307 : vector<16x1xf32>
    %309 = vector.broadcast %301 : vector<16x1xf32> to vector<16x32xf32>
    %310 = arith.subf %295, %309 : vector<16x32xf32>
    %cst_77 = arith.constant 9.99999996E-13 : f32
    %311 = vector.broadcast %cst_77 : f32 to vector<16x1xf32>
    %312 = arith.addf %308, %311 : vector<16x1xf32>
    %313 = math.rsqrt %312 : vector<16x1xf32>
    %314 = vector.broadcast %313 : vector<16x1xf32> to vector<16x32xf32>
    %315 = arith.mulf %310, %314 : vector<16x32xf32>
    %316 = vector.broadcast %296 : vector<1x32xf32> to vector<16x32xf32>
    %317 = arith.mulf %315, %316 : vector<16x32xf32>
    %318 = vector.broadcast %297 : vector<1x32xf32> to vector<16x32xf32>
    %319 = arith.addf %317, %318 : vector<16x32xf32>
    %320 = arith.truncf %319 : vector<16x32xf32> to vector<16x32xbf16>
    %c1_78 = arith.constant 1 : index
    %c0_79 = arith.constant 0 : index
    %c0_80 = arith.constant 0 : index
    %321 = vector.load %arg3[%c1_78, %c0_79, %c0_80] : memref<2x32x128xbf16, #tpu.memory_space<vmem>>, vector<1x32x128xbf16>
    %322 = vector.shape_cast %321 : vector<1x32x128xbf16> to vector<32x128xbf16>
    %cst_81 = arith.constant dense<0.000000e+00> : vector<16x128xf32>
    %323 = tpu.matmul %320, %322, %cst_81 {dimension_numbers = #tpu.dot_dimension_numbers<[1], [0], [0], [1], [0, 0, 1, 1], [], []>} : vector<16x32xbf16>, vector<32x128xbf16>, vector<16x128xf32> -> vector<16x128xf32>
    %324 = vector.extract_strided_slice %0 {offsets = [14, 0], sizes = [1, 128], strides = [1, 1]} : vector<24x128xf32> to vector<1x128xf32>
    %325 = vector.broadcast %324 : vector<1x128xf32> to vector<16x128xf32>
    %326 = arith.addf %323, %325 : vector<16x128xf32>
    %327 = arith.mulf %326, %326 : vector<16x128xf32>
    %328 = arith.mulf %326, %327 : vector<16x128xf32>
    %cst_82 = arith.constant 4.471500e-02 : f32
    %329 = vector.broadcast %cst_82 : f32 to vector<16x128xf32>
    %330 = arith.mulf %329, %328 : vector<16x128xf32>
    %331 = arith.addf %326, %330 : vector<16x128xf32>
    %cst_83 = arith.constant 0.797884583 : f32
    %332 = vector.broadcast %cst_83 : f32 to vector<16x128xf32>
    %333 = arith.mulf %332, %331 : vector<16x128xf32>
    %334 = math.tanh %333 : vector<16x128xf32>
    %cst_84 = arith.constant 1.000000e+00 : f32
    %335 = vector.broadcast %cst_84 : f32 to vector<16x128xf32>
    %336 = arith.addf %335, %334 : vector<16x128xf32>
    %cst_85 = arith.constant 5.000000e-01 : f32
    %337 = vector.broadcast %cst_85 : f32 to vector<16x128xf32>
    %338 = arith.mulf %337, %336 : vector<16x128xf32>
    %339 = arith.mulf %326, %338 : vector<16x128xf32>
    %340 = arith.truncf %339 : vector<16x128xf32> to vector<16x128xbf16>
    %c1_86 = arith.constant 1 : index
    %c0_87 = arith.constant 0 : index
    %c0_88 = arith.constant 0 : index
    %341 = vector.load %arg4[%c1_86, %c0_87, %c0_88] : memref<2x128x32xbf16, #tpu.memory_space<vmem>>, vector<1x128x32xbf16>
    %342 = vector.shape_cast %341 : vector<1x128x32xbf16> to vector<128x32xbf16>
    %cst_89 = arith.constant dense<0.000000e+00> : vector<16x32xf32>
    %343 = tpu.matmul %340, %342, %cst_89 {dimension_numbers = #tpu.dot_dimension_numbers<[1], [0], [0], [1], [0, 0, 1, 1], [], []>} : vector<16x128xbf16>, vector<128x32xbf16>, vector<16x32xf32> -> vector<16x32xf32>
    %344 = vector.extract_strided_slice %0 {offsets = [15, 0], sizes = [1, 32], strides = [1, 1]} : vector<24x128xf32> to vector<1x32xf32>
    %345 = vector.broadcast %344 : vector<1x32xf32> to vector<16x32xf32>
    %346 = arith.addf %343, %345 : vector<16x32xf32>
    %347 = arith.addf %319, %346 : vector<16x32xf32>
    %348 = vector.extract_strided_slice %0 {offsets = [16, 0], sizes = [1, 32], strides = [1, 1]} : vector<24x128xf32> to vector<1x32xf32>
    %349 = vector.extract_strided_slice %0 {offsets = [17, 0], sizes = [1, 32], strides = [1, 1]} : vector<24x128xf32> to vector<1x32xf32>
    %cst_90 = arith.constant dense<0.000000e+00> : vector<16xf32>
    %350 = vector.multi_reduction <add>, %347, %cst_90 [1] : vector<16x32xf32> to vector<16xf32>
    %351 = vector.shape_cast %350 : vector<16xf32> to vector<16x1xf32>
    %cst_91 = arith.constant 3.200000e+01 : f32
    %352 = vector.broadcast %cst_91 : f32 to vector<16x1xf32>
    %353 = arith.divf %351, %352 : vector<16x1xf32>
    %354 = vector.broadcast %353 : vector<16x1xf32> to vector<16x32xf32>
    %355 = arith.subf %347, %354 : vector<16x32xf32>
    %356 = arith.mulf %355, %355 : vector<16x32xf32>
    %cst_92 = arith.constant dense<0.000000e+00> : vector<16xf32>
    %357 = vector.multi_reduction <add>, %356, %cst_92 [1] : vector<16x32xf32> to vector<16xf32>
    %358 = vector.shape_cast %357 : vector<16xf32> to vector<16x1xf32>
    %cst_93 = arith.constant 3.200000e+01 : f32
    %359 = vector.broadcast %cst_93 : f32 to vector<16x1xf32>
    %360 = arith.divf %358, %359 : vector<16x1xf32>
    %361 = vector.broadcast %353 : vector<16x1xf32> to vector<16x32xf32>
    %362 = arith.subf %347, %361 : vector<16x32xf32>
    %cst_94 = arith.constant 9.99999996E-13 : f32
    %363 = vector.broadcast %cst_94 : f32 to vector<16x1xf32>
    %364 = arith.addf %360, %363 : vector<16x1xf32>
    %365 = math.rsqrt %364 : vector<16x1xf32>
    %366 = vector.broadcast %365 : vector<16x1xf32> to vector<16x32xf32>
    %367 = arith.mulf %362, %366 : vector<16x32xf32>
    %368 = vector.broadcast %348 : vector<1x32xf32> to vector<16x32xf32>
    %369 = arith.mulf %367, %368 : vector<16x32xf32>
    %370 = vector.broadcast %349 : vector<1x32xf32> to vector<16x32xf32>
    %371 = arith.addf %369, %370 : vector<16x32xf32>
    %372 = vector.extract_strided_slice %371 {offsets = [0, 0], sizes = [1, 32], strides = [1, 1]} : vector<16x32xf32> to vector<1x32xf32>
    %373 = vector.extract_strided_slice %371 {offsets = [8, 0], sizes = [1, 32], strides = [1, 1]} : vector<16x32xf32> to vector<1x32xf32>
    %374 = tpu.concatenate %372, %373 in 0 : vector<1x32xf32>, vector<1x32xf32> -> vector<2x32xf32>
    %c0_95 = arith.constant 0 : index
    %c0_96 = arith.constant 0 : index
    %375 = vector.load %arg6[%c0_95, %c0_96] : memref<192x128xbf16, #tpu.memory_space<vmem>>, vector<192x128xbf16>
    %376 = arith.truncf %374 : vector<2x32xf32> to vector<2x32xbf16>
    %377 = vector.extract_strided_slice %375 {offsets = [0, 0], sizes = [32, 32], strides = [1, 1]} : vector<192x128xbf16> to vector<32x32xbf16>
    %cst_97 = arith.constant dense<0.000000e+00> : vector<2x32xf32>
    %378 = tpu.matmul %376, %377, %cst_97 {dimension_numbers = #tpu.dot_dimension_numbers<[1], [0], [0], [1], [0, 0, 1, 1], [], []>} : vector<2x32xbf16>, vector<32x32xbf16>, vector<2x32xf32> -> vector<2x32xf32>
    %379 = vector.extract_strided_slice %0 {offsets = [18, 0], sizes = [1, 32], strides = [1, 1]} : vector<24x128xf32> to vector<1x32xf32>
    %380 = vector.broadcast %379 : vector<1x32xf32> to vector<2x32xf32>
    %381 = arith.addf %378, %380 : vector<2x32xf32>
    %382 = math.tanh %381 : vector<2x32xf32>
    %383 = arith.truncf %382 : vector<2x32xf32> to vector<2x32xbf16>
    %384 = vector.extract_strided_slice %375 {offsets = [32, 0], sizes = [32, 128], strides = [1, 1]} : vector<192x128xbf16> to vector<32x128xbf16>
    %cst_98 = arith.constant dense<0.000000e+00> : vector<2x128xf32>
    %385 = tpu.matmul %383, %384, %cst_98 {dimension_numbers = #tpu.dot_dimension_numbers<[1], [0], [0], [1], [0, 0, 1, 1], [], []>} : vector<2x32xbf16>, vector<32x128xbf16>, vector<2x128xf32> -> vector<2x128xf32>
    %386 = vector.extract_strided_slice %0 {offsets = [19, 0], sizes = [1, 128], strides = [1, 1]} : vector<24x128xf32> to vector<1x128xf32>
    %387 = vector.broadcast %386 : vector<1x128xf32> to vector<2x128xf32>
    %388 = arith.addf %385, %387 : vector<2x128xf32>
    %cst_99 = arith.constant 0.000000e+00 : f32
    %389 = vector.broadcast %cst_99 : f32 to vector<2x128xf32>
    %390 = arith.maximumf %388, %389 : vector<2x128xf32>
    %391 = arith.truncf %390 : vector<2x128xf32> to vector<2x128xbf16>
    %392 = vector.extract_strided_slice %375 {offsets = [64, 0], sizes = [128, 128], strides = [1, 1]} : vector<192x128xbf16> to vector<128x128xbf16>
    %cst_100 = arith.constant dense<0.000000e+00> : vector<2x128xf32>
    %393 = tpu.matmul %391, %392, %cst_100 {dimension_numbers = #tpu.dot_dimension_numbers<[1], [0], [0], [1], [0, 0, 1, 1], [], []>} : vector<2x128xbf16>, vector<128x128xbf16>, vector<2x128xf32> -> vector<2x128xf32>
    %394 = vector.extract_strided_slice %0 {offsets = [20, 0], sizes = [1, 128], strides = [1, 1]} : vector<24x128xf32> to vector<1x128xf32>
    %395 = vector.broadcast %394 : vector<1x128xf32> to vector<2x128xf32>
    %396 = arith.addf %393, %395 : vector<2x128xf32>
    %c0_101 = arith.constant 0 : index
    %c0_102 = arith.constant 0 : index
    %397 = vector.load %arg7[%c0_101, %c0_102] : memref<2x128xf32, #tpu.memory_space<vmem>>, vector<2x128xf32>
    tpu.vector_store %arg7[%c0_101, %c0_102], %396 {strides = array<i32>} : memref<2x128xf32, #tpu.memory_space<vmem>>, vector<2x128xf32>,
    return
  }
}

</mosaic_0001>

<llo_original>
// kernel: tpu_custom_call.1
$region0: #{tpu_custom_call.1}
  #allocation0 [shape = 'u32[]', space=smem, size = 0x4, offset = 0x4, fixed_abs, tag = 'smem constant byte address 0x4 - core index']
  #allocation1 [shape = 'u32[72,128]{1,0:T(1,128)}', space=vmem, size = 0x9000, scoped, tag = 'internal scratch']
  %s0 = inlined_call_operand.hbm [shape: f32[2,8,32], index: 0, kind: input, shape index: {}]
  %s1 = inlined_call_operand.hbm [shape: f32[16,16], index: 1, kind: input, shape index: {}]
  %s2 = inlined_call_operand.vmem [shape: bf16[2,32,128], index: 2, kind: input, shape index: {}]
  %s3 = inlined_call_operand.vmem [shape: bf16[2,32,128], index: 3, kind: input, shape index: {}]
  %s4 = inlined_call_operand.vmem [shape: bf16[2,128,32], index: 4, kind: input, shape index: {}]
  %s5 = inlined_call_operand.hbm [shape: f32[24,128], index: 5, kind: input, shape index: {}]
  %s6 = inlined_call_operand.vmem [shape: bf16[192,128], index: 6, kind: input, shape index: {}]
  %s7 = inlined_call_operand.hbm [shape: f32[2,128], index: 7, kind: output, shape index: {}]
  %s8 = sld [smem:[#allocation0]]
  $region50: #{tpu_custom_call.1} parent=0
    _
  %s10 = ssub.s32 1, %s8
  %s11 = scalar_select 0, %s10, %s8
  $region1: #{tpu_custom_call.1} parent=0
    #allocation2 [shape = 'u8[8192]{0}', space=vmem, size = 0x2000, scoped, tag = 'input window, operand 0, single buffered']
    #allocation3 [shape = 's32[1]{0}', space=sflag, size = 0x4, scoped, tag = 'scoped memory for tpu_custom_call.1']
    #allocation4 [shape = 's32[1]{0}', space=sflag, size = 0x4, scoped, tag = 'scoped memory for tpu_custom_call.1']
    #allocation5 [shape = 'u8[8192]{0}', space=vmem, size = 0x2000, scoped, tag = 'input window, operand 1, single buffered']
    #allocation6 [shape = 's32[1]{0}', space=sflag, size = 0x4, scoped, tag = 'scoped memory for tpu_custom_call.1']
    #allocation7 [shape = 'u8[12288]{0}', space=vmem, size = 0x3000, scoped, tag = 'input window, operand 5, single buffered']
    #allocation8 [shape = 'u8[1024]{0}', space=vmem, size = 0x400, scoped, tag = 'output window, operand 0, single buffered']
    %12 = vsyncpa [#allocation3], 0
    %13 = vsyncpa [#allocation6], 0
    %14 = vsyncpa [#allocation4], 0
    // Predicated region
    $region2: #{tpu_custom_call.1} parent=1 // pred_check
      _
    $region3: #{tpu_custom_call.1} parent=1 // pred_check_branch
      %16 = sbr.rel (0) target = $region5
    $region4: #{tpu_custom_call.1} parent=1 // pred_region
      %18 = vsyncadd [#allocation3], 0
      %s19 = sshll.u32 %s0, 4
      %s20 = int_to_ptr.hbm [resolvable:$true] %s19
      %s21 = sshll.u32 [#allocation2], 4
      %s22 = int_to_ptr.vmem [resolvable:$true] %s21
      %27 = dma.hbm_to_vmem [thread:$0]  %s20, 256, %s22, [#allocation3], 128, 128, 8
    $region5: #{tpu_custom_call.1} parent=1 // pred_fallthru
      _
    // Predicated region
    $region6: #{tpu_custom_call.1} parent=1 // pred_check
      _
    $region7: #{tpu_custom_call.1} parent=1 // pred_check_branch
      %29 = sbr.rel (0) target = $region9
    $region8: #{tpu_custom_call.1} parent=1 // pred_region
      %31 = vsyncadd [#allocation6], 0
      %s32 = sshll.u32 %s1, 4
      %s33 = int_to_ptr.hbm [resolvable:$true] %s32
      %s34 = sshll.u32 [#allocation5], 4
      %s35 = int_to_ptr.vmem [resolvable:$true] %s34
      %40 = dma.hbm_to_vmem [thread:$0]  %s33, 256, %s35, [#allocation6], 128, 128, 8
    $region9: #{tpu_custom_call.1} parent=1 // pred_fallthru
      _
    // Predicated region
    $region10: #{tpu_custom_call.1} parent=1 // pred_check
      _
    $region11: #{tpu_custom_call.1} parent=1 // pred_check_branch
      %42 = sbr.rel (0) target = $region13
    $region12: #{tpu_custom_call.1} parent=1 // pred_region
      _
    $region13: #{tpu_custom_call.1} parent=1 // pred_fallthru
      _
    // Predicated region
    $region14: #{tpu_custom_call.1} parent=1 // pred_check
      _
    $region15: #{tpu_custom_call.1} parent=1 // pred_check_branch
      %44 = sbr.rel (0) target = $region17
    $region16: #{tpu_custom_call.1} parent=1 // pred_region
      _
    $region17: #{tpu_custom_call.1} parent=1 // pred_fallthru
      _
    // Predicated region
    $region18: #{tpu_custom_call.1} parent=1 // pred_check
      _
    $region19: #{tpu_custom_call.1} parent=1 // pred_check_branch
      %46 = sbr.rel (0) target = $region21
    $region20: #{tpu_custom_call.1} parent=1 // pred_region
      _
    $region21: #{tpu_custom_call.1} parent=1 // pred_fallthru
      _
    // Predicated region
    $region22: #{tpu_custom_call.1} parent=1 // pred_check
      _
    $region23: #{tpu_custom_call.1} parent=1 // pred_check_branch
      %48 = sbr.rel (0) target = $region25
    $region24: #{tpu_custom_call.1} parent=1 // pred_region
      %50 = vsyncadd [#allocation6], 0
      %s51 = sshll.u32 %s5, 4
      %s52 = int_to_ptr.hbm [resolvable:$true] %s51
      %s53 = sshll.u32 [#allocation7], 4
      %s54 = int_to_ptr.vmem [resolvable:$true] %s53
      %59 = dma.hbm_to_vmem [thread:$0]  %s52, 384, %s54, [#allocation6], 128, 128, 8
    $region25: #{tpu_custom_call.1} parent=1 // pred_fallthru
      _
    // Predicated region
    $region26: #{tpu_custom_call.1} parent=1 // pred_check
      _
    $region27: #{tpu_custom_call.1} parent=1 // pred_check_branch
      %61 = sbr.rel (0) target = $region29
    $region28: #{tpu_custom_call.1} parent=1 // pred_region
      _
    $region29: #{tpu_custom_call.1} parent=1 // pred_fallthru
      _
    // Predicated region
    $region30: #{tpu_custom_call.1} parent=1 // pred_check
      _
    $region31: #{tpu_custom_call.1} parent=1 // pred_check_branch
      %63 = sbr.rel (0) target = $region33
    $region32: #{tpu_custom_call.1} parent=1 // pred_region
      %65 = dma.done [#allocation3], 256
    $region33: #{tpu_custom_call.1} parent=1 // pred_fallthru
      _
    // Predicated region
    $region34: #{tpu_custom_call.1} parent=1 // pred_check
      _
    $region35: #{tpu_custom_call.1} parent=1 // pred_check_branch
      %67 = sbr.rel (0) target = $region37
    $region36: #{tpu_custom_call.1} parent=1 // pred_region
      %69 = dma.done [#allocation6], 256
    $region37: #{tpu_custom_call.1} parent=1 // pred_fallthru
      _
    // Predicated region
    $region38: #{tpu_custom_call.1} parent=1 // pred_check
      _
    $region39: #{tpu_custom_call.1} parent=1 // pred_check_branch
      %71 = sbr.rel (0) target = $region41
    $region40: #{tpu_custom_call.1} parent=1 // pred_region
      %73 = dma.done [#allocation6], 384
    $region41: #{tpu_custom_call.1} parent=1 // pred_fallthru
      _
    %v75 = vld [vmem:[#allocation7] sm:$0xff]
    %v76 = vld [vmem:[#allocation7 + $0x8] sm:$0xff]
    %v77 = vld [vmem:[#allocation7 + $0x10] sm:$0xff]
    %v78 = vld [vmem:[#allocation2] sm:$0xff]
    %v79 = vld [vmem:[#allocation2 + $0x8] sm:$0xff]
    %vm80 = vcmask 261120
    %v81 = vsel %vm80, %v78, 0.0
    %82 = vadd.xlane.f32.xlu0 %v81
    %v83 = vpop.xlane.xlu0 %82
    %v84 = vsel %vm80, %v79, 0.0
    %85 = vadd.xlane.f32.xlu0 %v84
    %v86 = vpop.xlane.xlu0 %85
    %v87 = vrcp.pop 32.0
    %v88 = vmul.f32 32.0, %v87
    %v89 = vsub.f32 1.0, %v88
    %v90 = vmul.f32 %v87, %v89
    %v91 = vadd.f32 %v87, %v90
    %vm92 = vweird.f32 %v87
    %v93 = vsel %vm92, %v87, %v91
    %v94 = vmul.f32 %v83, %v93
    %v95 = vmul.f32 %v86, %v93
    %v96 = vsub.f32 %v78, %v94
    %v97 = vsub.f32 %v79, %v95
    %v98 = vmul.f32 %v96, %v96
    %v99 = vmul.f32 %v97, %v97
    %v100 = vsel %vm80, %v98, 0.0
    %101 = vadd.xlane.f32.xlu0 %v100
    %v102 = vpop.xlane.xlu0 %101
    %v103 = vsel %vm80, %v99, 0.0
    %104 = vadd.xlane.f32.xlu0 %v103
    %v105 = vpop.xlane.xlu0 %104
    %v106 = vmul.f32 %v102, %v93
    %v107 = vmul.f32 %v105, %v93
    %v108 = vadd.f32 %v106, 1e-12
    %v109 = vadd.f32 %v107, 1e-12
    %v110 = vrsqrt.pop %v108
    %v111 = vmul.f32 %v110, %v108
    %v112 = vmul.f32 %v111, %v110
    %v113 = vmul.f32 0.5, %v112
    %v114 = vsub.f32 1.5, %v113
    %v115 = vmul.f32 %v110, %v114
    %vm116 = vweird.f32 %v108
    %vm117 = vweird.f32 %v110
    %vm118 = vmor %vm116, %vm117
    %v119 = vsel %vm118, %v110, %v115
    %v120 = vrsqrt.pop %v109
    %v121 = vmul.f32 %v120, %v109
    %v122 = vmul.f32 %v121, %v120
    %v123 = vmul.f32 0.5, %v122
    %v124 = vsub.f32 1.5, %v123
    %v125 = vmul.f32 %v120, %v124
    %vm126 = vweird.f32 %v109
    %vm127 = vweird.f32 %v120
    %vm128 = vmor %vm126, %vm127
    %v129 = vsel %vm128, %v120, %v125
    %v130 = vmul.f32 %v96, %v119
    %v131 = vmul.f32 %v97, %v129
    %v132 = vperm.slane %v75, 0
    %v133 = vmul.f32 %v130, %v132
    %v134 = vmul.f32 %v131, %v132
    %v135 = vperm.slane %v75, 1
    %v136 = vadd.f32 %v133, %v135
    %v137 = vadd.f32 %v134, %v135
    %v138 = vld [vmem:[#allocation5] sm:$0xff]
    %v139 = vld [vmem:[#allocation5 + $0x8] sm:$0xff]
    %v140 = vld [vmem:[%s2] sm:$0xf]
    %v141 = vld [vmem:[%s2 + $0x4] sm:$0xf]
    %v142 = vld [vmem:[%s2 + $0x8] sm:$0xf]
    %v143 = vld [vmem:[%s2 + $0xc] sm:$0xf]
    %v144 = vpack.c.bf16 %v137, %v136
    %v145 = vperm.slane %v75, 2
    %v150 = vunpack.c.l.b16 %v140
    %v151 = vunpack.c.l.b16 %v141
    %v152 = vunpack.c.l.b16 %v142
    %v153 = vunpack.c.l.b16 %v143
    %v154 = vpack.c.b16 %v151, %v150
    %v155 = vpack.c.b16 %v153, %v152
    %v159 = vsel %vm80, %v144, 0
    %161 = vmatpush.bf16.msra.mxu0 0
    %162 = vmatpush.bf16.msra.mxu0 0
    %163 = vmatpush.bf16.msra.mxu0 0
    %164 = vmatpush.bf16.msra.mxu0 0
    %165 = vmatpush.bf16.msra.mxu0 0
    %166 = vmatpush.bf16.msra.mxu0 0
    %167 = vmatpush.bf16.msra.mxu0 %v155
    %168 = vmatpush.bf16.msra.mxu0 %v154
    %169 = vmatmul.bf16.gmra.mxu0 %v159
    %v170 = vpop.f32.mrf.mxu0
    %v171 = vadd.f32 %v145, %v170
    %v172 = vpop.f32.mrf.mxu0
    %v173 = vadd.f32 %v145, %v172
    %174 = vdwg.mxu0
    %v175 = vpack.c.bf16 %v173, %v171
    %177 = vrot.lane.b32.xlu0 %v175, 96
    %v178 = vpop.permute.xlu0 %177
    %vm179 = vcmask 64512
    %v181 = vsel %vm179, %v175, 0
    %v184 = vsel %vm179, %v178, 0
    %186 = vmatpush.bf16.xpose.msra.mxu0 0
    %187 = vmatpush.bf16.xpose.msra.mxu0 0
    %188 = vmatpush.bf16.xpose.msra.mxu0 0
    %189 = vmatpush.bf16.xpose.msra.mxu0 0
    %190 = vmatpush.bf16.xpose.msra.mxu0 0
    %191 = vmatpush.bf16.xpose.msra.mxu0 0
    %192 = vmatpush.bf16.xpose.msra.mxu0 0
    %193 = vmatpush.bf16.xpose.msra.mxu0 %v184
    %194 = vmatmul.bf16.gmra.mxu0 %v181
    %v195 = vpop.f32.mrf.mxu0
    %v196 = vadd.f32 %v138, %v195
    %v197 = vpop.f32.mrf.mxu0
    %v198 = vadd.f32 %v139, %v197
    %199 = vdwg.mxu0
    %vm200 = vcmask 130048
    %v201 = vsel %vm200, %v196, -inf
    %202 = vmax.xlane.f32.xlu0 %v201
    %v203 = vpop.xlane.xlu0 %202
    %v204 = vsel %vm200, %v198, -inf
    %205 = vmax.xlane.f32.xlu0 %v204
    %v206 = vpop.xlane.xlu0 %205
    %v207 = vsub.f32 %v196, %v203
    %v208 = vsub.f32 %v198, %v206
    %v209 = vmul.f32 %v207, 1.442695
    %v210 = vpow.pop %v209
    %v211 = vmul.f32 %v208, 1.442695
    %v212 = vpow.pop %v211
    %v213 = vsel %vm200, %v210, 0.0
    %214 = vadd.xlane.f32.xlu0 %v213
    %v215 = vpop.xlane.xlu0 %214
    %v216 = vsel %vm200, %v212, 0.0
    %217 = vadd.xlane.f32.xlu0 %v216
    %v218 = vpop.xlane.xlu0 %217
    %v219 = vrcp.pop %v215
    %v220 = vrcp.pop %v218
    %v221 = vmul.f32 %v210, %v219
    %v222 = vmul.f32 %v212, %v220
    %v223 = vpack.c.bf16 %v222, %v221
    %224 = vrot.lane.b32.xlu0 %v175, 64
    %v225 = vpop.permute.xlu0 %224
    %v228 = vsel %vm200, %v223, 0
    %230 = vmatpush.bf16.msra.mxu0 0
    %231 = vmatpush.bf16.msra.mxu0 0
    %232 = vmatpush.bf16.msra.mxu0 0
    %233 = vmatpush.bf16.msra.mxu0 0
    %234 = vmatpush.bf16.msra.mxu0 0
    %235 = vmatpush.bf16.msra.mxu0 0
    %236 = vmatpush.bf16.msra.mxu0 0
    %237 = vmatpush.bf16.msra.mxu0 %v225
    %238 = vmatmul.bf16.gmra.mxu0 %v228
    %v239 = vpop.f32.mrf.mxu0
    %v240 = vadd.f32 0.0, %v239
    %v241 = vpop.f32.mrf.mxu0
    %v242 = vadd.f32 0.0, %v241
    %243 = vdwg.mxu0
    %244 = vrot.lane.b32.xlu0 %v175, 120
    %v245 = vpop.permute.xlu0 %244
    %246 = vrot.lane.b32.xlu0 %v175, 88
    %v247 = vpop.permute.xlu0 %246
    %v249 = vsel %vm179, %v245, 0
    %v252 = vsel %vm179, %v247, 0
    %254 = vmatpush.bf16.xpose.msra.mxu0 0
    %255 = vmatpush.bf16.xpose.msra.mxu0 0
    %256 = vmatpush.bf16.xpose.msra.mxu0 0
    %257 = vmatpush.bf16.xpose.msra.mxu0 0
    %258 = vmatpush.bf16.xpose.msra.mxu0 0
    %259 = vmatpush.bf16.xpose.msra.mxu0 0
    %260 = vmatpush.bf16.xpose.msra.mxu0 0
    %261 = vmatpush.bf16.xpose.msra.mxu0 %v252
    %262 = vmatmul.bf16.gmra.mxu0 %v249
    %v263 = vpop.f32.mrf.mxu0
    %v264 = vadd.f32 %v138, %v263
    %v265 = vpop.f32.mrf.mxu0
    %v266 = vadd.f32 %v139, %v265
    %267 = vdwg.mxu0
    %v268 = vsel %vm200, %v264, -inf
    %269 = vmax.xlane.f32.xlu0 %v268
    %v270 = vpop.xlane.xlu0 %269
    %v271 = vsel %vm200, %v266, -inf
    %272 = vmax.xlane.f32.xlu0 %v271
    %v273 = vpop.xlane.xlu0 %272
    %v274 = vsub.f32 %v264, %v270
    %v275 = vsub.f32 %v266, %v273
    %v276 = vmul.f32 %v274, 1.442695
    %v277 = vpow.pop %v276
    %v278 = vmul.f32 %v275, 1.442695
    %v279 = vpow.pop %v278
    %v280 = vsel %vm200, %v277, 0.0
    %281 = vadd.xlane.f32.xlu0 %v280
    %v282 = vpop.xlane.xlu0 %281
    %v283 = vsel %vm200, %v279, 0.0
    %284 = vadd.xlane.f32.xlu0 %v283
    %v285 = vpop.xlane.xlu0 %284
    %v286 = vrcp.pop %v282
    %v287 = vrcp.pop %v285
    %v288 = vmul.f32 %v277, %v286
    %v289 = vmul.f32 %v279, %v287
    %v290 = vpack.c.bf16 %v289, %v288
    %291 = vrot.lane.b32.xlu0 %v175, 56
    %v292 = vpop.permute.xlu0 %291
    %v295 = vsel %vm200, %v290, 0
    %297 = vmatpush.bf16.msra.mxu0 0
    %298 = vmatpush.bf16.msra.mxu0 0
    %299 = vmatpush.bf16.msra.mxu0 0
    %300 = vmatpush.bf16.msra.mxu0 0
    %301 = vmatpush.bf16.msra.mxu0 0
    %302 = vmatpush.bf16.msra.mxu0 0
    %303 = vmatpush.bf16.msra.mxu0 0
    %304 = vmatpush.bf16.msra.mxu0 %v292
    %305 = vmatmul.bf16.gmra.mxu0 %v295
    %v306 = vpop.f32.mrf.mxu0
    %v307 = vadd.f32 0.0, %v306
    %v308 = vpop.f32.mrf.mxu0
    %v309 = vadd.f32 0.0, %v308
    %310 = vdwg.mxu0
    %311 = vrot.lane.b32.xlu0 %v175, 112
    %v312 = vpop.permute.xlu0 %311
    %313 = vrot.lane.b32.xlu0 %v175, 80
    %v314 = vpop.permute.xlu0 %313
    %v316 = vsel %vm179, %v312, 0
    %v319 = vsel %vm179, %v314, 0
    %321 = vmatpush.bf16.xpose.msra.mxu0 0
    %322 = vmatpush.bf16.xpose.msra.mxu0 0
    %323 = vmatpush.bf16.xpose.msra.mxu0 0
    %324 = vmatpush.bf16.xpose.msra.mxu0 0
    %325 = vmatpush.bf16.xpose.msra.mxu0 0
    %326 = vmatpush.bf16.xpose.msra.mxu0 0
    %327 = vmatpush.bf16.xpose.msra.mxu0 0
    %328 = vmatpush.bf16.xpose.msra.mxu0 %v319
    %329 = vmatmul.bf16.gmra.mxu0 %v316
    %v330 = vpop.f32.mrf.mxu0
    %v331 = vadd.f32 %v138, %v330
    %v332 = vpop.f32.mrf.mxu0
    %v333 = vadd.f32 %v139, %v332
    %334 = vdwg.mxu0
    %v335 = vsel %vm200, %v331, -inf
    %336 = vmax.xlane.f32.xlu0 %v335
    %v337 = vpop.xlane.xlu0 %336
    %v338 = vsel %vm200, %v333, -inf
    %339 = vmax.xlane.f32.xlu0 %v338
    %v340 = vpop.xlane.xlu0 %339
    %v341 = vsub.f32 %v331, %v337
    %v342 = vsub.f32 %v333, %v340
    %v343 = vmul.f32 %v341, 1.442695
    %v344 = vpow.pop %v343
    %v345 = vmul.f32 %v342, 1.442695
    %v346 = vpow.pop %v345
    %v347 = vsel %vm200, %v344, 0.0
    %348 = vadd.xlane.f32.xlu0 %v347
    %v349 = vpop.xlane.xlu0 %348
    %v350 = vsel %vm200, %v346, 0.0
    %351 = vadd.xlane.f32.xlu0 %v350
    %v352 = vpop.xlane.xlu0 %351
    %v353 = vrcp.pop %v349
    %v354 = vrcp.pop %v352
    %v355 = vmul.f32 %v344, %v353
    %v356 = vmul.f32 %v346, %v354
    %v357 = vpack.c.bf16 %v356, %v355
    %358 = vrot.lane.b32.xlu0 %v175, 48
    %v359 = vpop.permute.xlu0 %358
    %v362 = vsel %vm200, %v357, 0
    %364 = vmatpush.bf16.msra.mxu0 0
    %365 = vmatpush.bf16.msra.mxu0 0
    %366 = vmatpush.bf16.msra.mxu0 0
    %367 = vmatpush.bf16.msra.mxu0 0
    %368 = vmatpush.bf16.msra.mxu0 0
    %369 = vmatpush.bf16.msra.mxu0 0
    %370 = vmatpush.bf16.msra.mxu0 0
    %371 = vmatpush.bf16.msra.mxu0 %v359
    %372 = vmatmul.bf16.gmra.mxu0 %v362
    %v373 = vpop.f32.mrf.mxu0
    %v374 = vadd.f32 0.0, %v373
    %v375 = vpop.f32.mrf.mxu0
    %v376 = vadd.f32 0.0, %v375
    %377 = vdwg.mxu0
    %378 = vrot.lane.b32.xlu0 %v175, 104
    %v379 = vpop.permute.xlu0 %378
    %380 = vrot.lane.b32.xlu0 %v175, 72
    %v381 = vpop.permute.xlu0 %380
    %v383 = vsel %vm179, %v379, 0
    %v386 = vsel %vm179, %v381, 0
    %388 = vmatpush.bf16.xpose.msra.mxu0 0
    %389 = vmatpush.bf16.xpose.msra.mxu0 0
    %390 = vmatpush.bf16.xpose.msra.mxu0 0
    %391 = vmatpush.bf16.xpose.msra.mxu0 0
    %392 = vmatpush.bf16.xpose.msra.mxu0 0
    %393 = vmatpush.bf16.xpose.msra.mxu0 0
    %394 = vmatpush.bf16.xpose.msra.mxu0 0
    %395 = vmatpush.bf16.xpose.msra.mxu0 %v386
    %396 = vmatmul.bf16.gmra.mxu0 %v383
    %v397 = vpop.f32.mrf.mxu0
    %v398 = vadd.f32 %v138, %v397
    %v399 = vpop.f32.mrf.mxu0
    %v400 = vadd.f32 %v139, %v399
    %401 = vdwg.mxu0
    %v402 = vsel %vm200, %v398, -inf
    %403 = vmax.xlane.f32.xlu0 %v402
    %v404 = vpop.xlane.xlu0 %403
    %v405 = vsel %vm200, %v400, -inf
    %406 = vmax.xlane.f32.xlu0 %v405
    %v407 = vpop.xlane.xlu0 %406
    %v408 = vsub.f32 %v398, %v404
    %v409 = vsub.f32 %v400, %v407
    %v410 = vmul.f32 %v408, 1.442695
    %v411 = vpow.pop %v410
    %v412 = vmul.f32 %v409, 1.442695
    %v413 = vpow.pop %v412
    %v414 = vsel %vm200, %v411, 0.0
    %415 = vadd.xlane.f32.xlu0 %v414
    %v416 = vpop.xlane.xlu0 %415
    %v417 = vsel %vm200, %v413, 0.0
    %418 = vadd.xlane.f32.xlu0 %v417
    %v419 = vpop.xlane.xlu0 %418
    %v420 = vrcp.pop %v416
    %v421 = vrcp.pop %v419
    %v422 = vmul.f32 %v411, %v420
    %v423 = vmul.f32 %v413, %v421
    %v424 = vpack.c.bf16 %v423, %v422
    %425 = vrot.lane.b32.xlu0 %v175, 40
    %v426 = vpop.permute.xlu0 %425
    %v429 = vsel %vm200, %v424, 0
    %431 = vmatpush.bf16.msra.mxu0 0
    %432 = vmatpush.bf16.msra.mxu0 0
    %433 = vmatpush.bf16.msra.mxu0 0
    %434 = vmatpush.bf16.msra.mxu0 0
    %435 = vmatpush.bf16.msra.mxu0 0
    %436 = vmatpush.bf16.msra.mxu0 0
    %437 = vmatpush.bf16.msra.mxu0 0
    %438 = vmatpush.bf16.msra.mxu0 %v426
    %439 = vmatmul.bf16.gmra.mxu0 %v429
    %v440 = vpop.f32.mrf.mxu0
    %v441 = vadd.f32 0.0, %v440
    %v442 = vpop.f32.mrf.mxu0
    %v443 = vadd.f32 0.0, %v442
    %444 = vdwg.mxu0
    %447 = vrot.lane.b32.xlu0 %v307, 8
    %v448 = vpop.permute.xlu0 %447
    %449 = vrot.lane.b32.xlu0 %v309, 8
    %v450 = vpop.permute.xlu0 %449
    %455 = vrot.lane.b32.xlu0 %v374, 16
    %v456 = vpop.permute.xlu0 %455
    %457 = vrot.lane.b32.xlu0 %v376, 16
    %v458 = vpop.permute.xlu0 %457
    %463 = vrot.lane.b32.xlu0 %v441, 24
    %v464 = vpop.permute.xlu0 %463
    %465 = vrot.lane.b32.xlu0 %v443, 24
    %v466 = vpop.permute.xlu0 %465
    %v469 = vsel %vm179, %v240, %v448
    %v470 = vsel %vm179, %v242, %v450
    %v471 = vsel %vm200, %v469, %v456
    %v472 = vsel %vm200, %v470, %v458
    %vm473 = vcmask 195584
    %v474 = vsel %vm473, %v471, %v464
    %v475 = vsel %vm473, %v472, %v466
    %v476 = vpack.c.bf16 %v475, %v474
    %v477 = vperm.slane %v75, 3
    %478 = vrot.lane.b32.xlu0 %v154, 32
    %v479 = vpop.permute.xlu0 %478
    %480 = vrot.lane.b32.xlu0 %v155, 32
    %v481 = vpop.permute.xlu0 %480
    %v485 = vsel %vm80, %v476, 0
    %487 = vmatpush.bf16.msra.mxu0 0
    %488 = vmatpush.bf16.msra.mxu0 0
    %489 = vmatpush.bf16.msra.mxu0 0
    %490 = vmatpush.bf16.msra.mxu0 0
    %491 = vmatpush.bf16.msra.mxu0 0
    %492 = vmatpush.bf16.msra.mxu0 0
    %493 = vmatpush.bf16.msra.mxu0 %v481
    %494 = vmatpush.bf16.msra.mxu0 %v479
    %495 = vmatmul.bf16.gmra.mxu0 %v485
    %v496 = vpop.f32.mrf.mxu0
    %v497 = vadd.f32 %v477, %v496
    %v498 = vpop.f32.mrf.mxu0
    %v499 = vadd.f32 %v477, %v498
    %500 = vdwg.mxu0
    %v501 = vadd.f32 %v136, %v497
    %v502 = vadd.f32 %v137, %v499
    %v503 = vsel %vm80, %v501, 0.0
    %504 = vadd.xlane.f32.xlu0 %v503
    %v505 = vpop.xlane.xlu0 %504
    %v506 = vsel %vm80, %v502, 0.0
    %507 = vadd.xlane.f32.xlu0 %v506
    %v508 = vpop.xlane.xlu0 %507
    %v509 = vmul.f32 %v505, %v93
    %v510 = vmul.f32 %v508, %v93
    %v511 = vsub.f32 %v501, %v509
    %v512 = vsub.f32 %v502, %v510
    %v513 = vmul.f32 %v511, %v511
    %v514 = vmul.f32 %v512, %v512
    %v515 = vsel %vm80, %v513, 0.0
    %516 = vadd.xlane.f32.xlu0 %v515
    %v517 = vpop.xlane.xlu0 %516
    %v518 = vsel %vm80, %v514, 0.0
    %519 = vadd.xlane.f32.xlu0 %v518
    %v520 = vpop.xlane.xlu0 %519
    %v521 = vmul.f32 %v517, %v93
    %v522 = vmul.f32 %v520, %v93
    %v523 = vadd.f32 %v521, 1e-12
    %v524 = vadd.f32 %v522, 1e-12
    %v525 = vrsqrt.pop %v523
    %v526 = vmul.f32 %v525, %v523
    %v527 = vmul.f32 %v526, %v525
    %v528 = vmul.f32 0.5, %v527
    %v529 = vsub.f32 1.5, %v528
    %v530 = vmul.f32 %v525, %v529
    %vm531 = vweird.f32 %v523
    %vm532 = vweird.f32 %v525
    %vm533 = vmor %vm531, %vm532
    %v534 = vsel %vm533, %v525, %v530
    %v535 = vrsqrt.pop %v524
    %v536 = vmul.f32 %v535, %v524
    %v537 = vmul.f32 %v536, %v535
    %v538 = vmul.f32 0.5, %v537
    %v539 = vsub.f32 1.5, %v538
    %v540 = vmul.f32 %v535, %v539
    %vm541 = vweird.f32 %v524
    %vm542 = vweird.f32 %v535
    %vm543 = vmor %vm541, %vm542
    %v544 = vsel %vm543, %v535, %v540
    %v545 = vmul.f32 %v511, %v534
    %v546 = vmul.f32 %v512, %v544
    %v547 = vperm.slane %v75, 4
    %v548 = vmul.f32 %v545, %v547
    %v549 = vmul.f32 %v546, %v547
    %v550 = vperm.slane %v75, 5
    %v551 = vadd.f32 %v548, %v550
    %v552 = vadd.f32 %v549, %v550
    %v553 = vpack.c.bf16 %v552, %v551
    %v554 = vld [vmem:[%s3] sm:$0xf]
    %v555 = vld [vmem:[%s3 + $0x4] sm:$0xf]
    %v556 = vld [vmem:[%s3 + $0x8] sm:$0xf]
    %v557 = vld [vmem:[%s3 + $0xc] sm:$0xf]
    %v558 = vperm.slane %v75, 6
    %v563 = vunpack.c.l.b16 %v554
    %v564 = vunpack.c.l.b16 %v555
    %v565 = vunpack.c.l.b16 %v556
    %v566 = vunpack.c.l.b16 %v557
    %v567 = vpack.c.b16 %v564, %v563
    %v568 = vpack.c.b16 %v566, %v565
    %v572 = vsel %vm80, %v553, 0
    %574 = vmatpush.bf16.msra.mxu0 0
    %575 = vmatpush.bf16.msra.mxu0 0
    %576 = vmatpush.bf16.msra.mxu0 0
    %577 = vmatpush.bf16.msra.mxu0 0
    %578 = vmatpush.bf16.msra.mxu0 0
    %579 = vmatpush.bf16.msra.mxu0 0
    %580 = vmatpush.bf16.msra.mxu0 %v568
    %581 = vmatpush.bf16.msra.mxu0 %v567
    %582 = vmatmul.bf16.gmra.mxu0 %v572
    %v583 = vpop.f32.mrf.mxu0
    %v584 = vadd.f32 %v558, %v583
    %v585 = vpop.f32.mrf.mxu0
    %v586 = vadd.f32 %v558, %v585
    %587 = vdwg.mxu0
    %v588 = vmul.f32 %v584, %v584
    %v589 = vmul.f32 %v586, %v586
    %v590 = vmul.f32 %v584, %v588
    %v591 = vmul.f32 %v586, %v589
    %v592 = vmul.f32 %v590, 0.044715
    %v593 = vmul.f32 %v591, 0.044715
    %v594 = vadd.f32 %v584, %v592
    %v595 = vadd.f32 %v586, %v593
    %v596 = vmul.f32 %v594, 0.7978846
    %v597 = vmul.f32 %v595, 0.7978846
    %v598 = vtanh.pop %v596
    %v599 = vtanh.pop %v597
    %v600 = vadd.f32 %v598, 1.0
    %v601 = vadd.f32 %v599, 1.0
    %v602 = vmul.f32 %v600, 0.5
    %v603 = vmul.f32 %v601, 0.5
    %v604 = vmul.f32 %v584, %v602
    %v605 = vmul.f32 %v586, %v603
    %v606 = vpack.c.bf16 %v605, %v604
    %v607 = vld [vmem:[%s4] sm:$0xf]
    %v608 = vld [vmem:[%s4 + $0x4] sm:$0xf]
    %v609 = vld [vmem:[%s4 + $0x8] sm:$0xf]
    %v610 = vld [vmem:[%s4 + $0xc] sm:$0xf]
    %v611 = vld [vmem:[%s4 + $0x10] sm:$0xf]
    %v612 = vld [vmem:[%s4 + $0x14] sm:$0xf]
    %v613 = vld [vmem:[%s4 + $0x18] sm:$0xf]
    %v614 = vld [vmem:[%s4 + $0x1c] sm:$0xf]
    %v615 = vld [vmem:[%s4 + $0x20] sm:$0xf]
    %v616 = vld [vmem:[%s4 + $0x24] sm:$0xf]
    %v617 = vld [vmem:[%s4 + $0x28] sm:$0xf]
    %v618 = vld [vmem:[%s4 + $0x2c] sm:$0xf]
    %v619 = vld [vmem:[%s4 + $0x30] sm:$0xf]
    %v620 = vld [vmem:[%s4 + $0x34] sm:$0xf]
    %v621 = vld [vmem:[%s4 + $0x38] sm:$0xf]
    %v622 = vld [vmem:[%s4 + $0x3c] sm:$0xf]
    %v623 = vperm.slane %v75, 7
    %v640 = vunpack.c.l.b16 %v607
    %v641 = vunpack.c.l.b16 %v608
    %v642 = vunpack.c.l.b16 %v609
    %v643 = vunpack.c.l.b16 %v610
    %v644 = vunpack.c.l.b16 %v611
    %v645 = vunpack.c.l.b16 %v612
    %v646 = vunpack.c.l.b16 %v613
    %v647 = vunpack.c.l.b16 %v614
    %v648 = vunpack.c.l.b16 %v615
    %v649 = vunpack.c.l.b16 %v616
    %v650 = vunpack.c.l.b16 %v617
    %v651 = vunpack.c.l.b16 %v618
    %v652 = vunpack.c.l.b16 %v619
    %v653 = vunpack.c.l.b16 %v620
    %v654 = vunpack.c.l.b16 %v621
    %v655 = vunpack.c.l.b16 %v622
    %v656 = vpack.c.b16 %v641, %v640
    %v657 = vpack.c.b16 %v643, %v642
    %v658 = vpack.c.b16 %v645, %v644
    %v659 = vpack.c.b16 %v647, %v646
    %v660 = vpack.c.b16 %v649, %v648
    %v661 = vpack.c.b16 %v651, %v650
    %v662 = vpack.c.b16 %v653, %v652
    %v663 = vpack.c.b16 %v655, %v654
    %672 = vmatpush.bf16.msra.mxu0 %v663
    %673 = vmatpush.bf16.msra.mxu0 %v662
    %674 = vmatpush.bf16.msra.mxu0 %v661
    %675 = vmatpush.bf16.msra.mxu0 %v660
    %676 = vmatpush.bf16.msra.mxu0 %v659
    %677 = vmatpush.bf16.msra.mxu0 %v658
    %678 = vmatpush.bf16.msra.mxu0 %v657
    %679 = vmatpush.bf16.msra.mxu0 %v656
    %680 = vmatmul.bf16.gmra.mxu0 %v606
    %v681 = vpop.f32.mrf.mxu0
    %v682 = vadd.f32 %v623, %v681
    %v683 = vpop.f32.mrf.mxu0
    %v684 = vadd.f32 %v623, %v683
    %685 = vdwg.mxu0
    %v686 = vadd.f32 %v551, %v682
    %v687 = vadd.f32 %v552, %v684
    %v688 = vsel %vm80, %v686, 0.0
    %689 = vadd.xlane.f32.xlu0 %v688
    %v690 = vpop.xlane.xlu0 %689
    %v691 = vsel %vm80, %v687, 0.0
    %692 = vadd.xlane.f32.xlu0 %v691
    %v693 = vpop.xlane.xlu0 %692
    %v694 = vmul.f32 %v690, %v93
    %v695 = vmul.f32 %v693, %v93
    %v696 = vsub.f32 %v686, %v694
    %v697 = vsub.f32 %v687, %v695
    %v698 = vmul.f32 %v696, %v696
    %v699 = vmul.f32 %v697, %v697
    %v700 = vsel %vm80, %v698, 0.0
    %701 = vadd.xlane.f32.xlu0 %v700
    %v702 = vpop.xlane.xlu0 %701
    %v703 = vsel %vm80, %v699, 0.0
    %704 = vadd.xlane.f32.xlu0 %v703
    %v705 = vpop.xlane.xlu0 %704
    %v706 = vmul.f32 %v702, %v93
    %v707 = vmul.f32 %v705, %v93
    %v708 = vadd.f32 %v706, 1e-12
    %v709 = vadd.f32 %v707, 1e-12
    %v710 = vrsqrt.pop %v708
    %v711 = vmul.f32 %v710, %v708
    %v712 = vmul.f32 %v711, %v710
    %v713 = vmul.f32 0.5, %v712
    %v714 = vsub.f32 1.5, %v713
    %v715 = vmul.f32 %v710, %v714
    %vm716 = vweird.f32 %v708
    %vm717 = vweird.f32 %v710
    %vm718 = vmor %vm716, %vm717
    %v719 = vsel %vm718, %v710, %v715
    %v720 = vrsqrt.pop %v709
    %v721 = vmul.f32 %v720, %v709
    %v722 = vmul.f32 %v721, %v720
    %v723 = vmul.f32 0.5, %v722
    %v724 = vsub.f32 1.5, %v723
    %v725 = vmul.f32 %v720, %v724
    %vm726 = vweird.f32 %v709
    %vm727 = vweird.f32 %v720
    %vm728 = vmor %vm726, %vm727
    %v729 = vsel %vm728, %v720, %v725
    %v730 = vmul.f32 %v696, %v719
    %v731 = vmul.f32 %v697, %v729
    %v732 = vperm.slane %v76, 0
    %v733 = vmul.f32 %v730, %v732
    %v734 = vmul.f32 %v731, %v732
    %v735 = vperm.slane %v76, 1
    %v736 = vadd.f32 %v733, %v735
    %v737 = vadd.f32 %v734, %v735
    %s738 = scalar_lea.vmem %s2, 16
    %v739 = vld [vmem:[%s738] sm:$0xf]
    %v740 = vld [vmem:[%s738 + $0x4] sm:$0xf]
    %v741 = vld [vmem:[%s738 + $0x8] sm:$0xf]
    %v742 = vld [vmem:[%s738 + $0xc] sm:$0xf]
    %v743 = vpack.c.bf16 %v737, %v736
    %v744 = vperm.slane %v76, 2
    %v749 = vunpack.c.l.b16 %v739
    %v750 = vunpack.c.l.b16 %v740
    %v751 = vunpack.c.l.b16 %v741
    %v752 = vunpack.c.l.b16 %v742
    %v753 = vpack.c.b16 %v750, %v749
    %v754 = vpack.c.b16 %v752, %v751
    %v758 = vsel %vm80, %v743, 0
    %760 = vmatpush.bf16.msra.mxu0 0
    %761 = vmatpush.bf16.msra.mxu0 0
    %762 = vmatpush.bf16.msra.mxu0 0
    %763 = vmatpush.bf16.msra.mxu0 0
    %764 = vmatpush.bf16.msra.mxu0 0
    %765 = vmatpush.bf16.msra.mxu0 0
    %766 = vmatpush.bf16.msra.mxu0 %v754
    %767 = vmatpush.bf16.msra.mxu0 %v753
    %768 = vmatmul.bf16.gmra.mxu0 %v758
    %v769 = vpop.f32.mrf.mxu0
    %v770 = vadd.f32 %v744, %v769
    %v771 = vpop.f32.mrf.mxu0
    %v772 = vadd.f32 %v744, %v771
    %773 = vdwg.mxu0
    %v774 = vpack.c.bf16 %v772, %v770
    %776 = vrot.lane.b32.xlu0 %v774, 96
    %v777 = vpop.permute.xlu0 %776
    %v779 = vsel %vm179, %v774, 0
    %v782 = vsel %vm179, %v777, 0
    %784 = vmatpush.bf16.xpose.msra.mxu0 0
    %785 = vmatpush.bf16.xpose.msra.mxu0 0
    %786 = vmatpush.bf16.xpose.msra.mxu0 0
    %787 = vmatpush.bf16.xpose.msra.mxu0 0
    %788 = vmatpush.bf16.xpose.msra.mxu0 0
    %789 = vmatpush.bf16.xpose.msra.mxu0 0
    %790 = vmatpush.bf16.xpose.msra.mxu0 0
    %791 = vmatpush.bf16.xpose.msra.mxu0 %v782
    %792 = vmatmul.bf16.gmra.mxu0 %v779
    %v793 = vpop.f32.mrf.mxu0
    %v794 = vadd.f32 %v138, %v793
    %v795 = vpop.f32.mrf.mxu0
    %v796 = vadd.f32 %v139, %v795
    %797 = vdwg.mxu0
    %v798 = vsel %vm200, %v794, -inf
    %799 = vmax.xlane.f32.xlu0 %v798
    %v800 = vpop.xlane.xlu0 %799
    %v801 = vsel %vm200, %v796, -inf
    %802 = vmax.xlane.f32.xlu0 %v801
    %v803 = vpop.xlane.xlu0 %802
    %v804 = vsub.f32 %v794, %v800
    %v805 = vsub.f32 %v796, %v803
    %v806 = vmul.f32 %v804, 1.442695
    %v807 = vpow.pop %v806
    %v808 = vmul.f32 %v805, 1.442695
    %v809 = vpow.pop %v808
    %v810 = vsel %vm200, %v807, 0.0
    %811 = vadd.xlane.f32.xlu0 %v810
    %v812 = vpop.xlane.xlu0 %811
    %v813 = vsel %vm200, %v809, 0.0
    %814 = vadd.xlane.f32.xlu0 %v813
    %v815 = vpop.xlane.xlu0 %814
    %v816 = vrcp.pop %v812
    %v817 = vrcp.pop %v815
    %v818 = vmul.f32 %v807, %v816
    %v819 = vmul.f32 %v809, %v817
    %v820 = vpack.c.bf16 %v819, %v818
    %821 = vrot.lane.b32.xlu0 %v774, 64
    %v822 = vpop.permute.xlu0 %821
    %v825 = vsel %vm200, %v820, 0
    %827 = vmatpush.bf16.msra.mxu0 0
    %828 = vmatpush.bf16.msra.mxu0 0
    %829 = vmatpush.bf16.msra.mxu0 0
    %830 = vmatpush.bf16.msra.mxu0 0
    %831 = vmatpush.bf16.msra.mxu0 0
    %832 = vmatpush.bf16.msra.mxu0 0
    %833 = vmatpush.bf16.msra.mxu0 0
    %834 = vmatpush.bf16.msra.mxu0 %v822
    %835 = vmatmul.bf16.gmra.mxu0 %v825
    %v836 = vpop.f32.mrf.mxu0
    %v837 = vadd.f32 0.0, %v836
    %v838 = vpop.f32.mrf.mxu0
    %v839 = vadd.f32 0.0, %v838
    %840 = vdwg.mxu0
    %841 = vrot.lane.b32.xlu0 %v774, 120
    %v842 = vpop.permute.xlu0 %841
    %843 = vrot.lane.b32.xlu0 %v774, 88
    %v844 = vpop.permute.xlu0 %843
    %v846 = vsel %vm179, %v842, 0
    %v849 = vsel %vm179, %v844, 0
    %851 = vmatpush.bf16.xpose.msra.mxu0 0
    %852 = vmatpush.bf16.xpose.msra.mxu0 0
    %853 = vmatpush.bf16.xpose.msra.mxu0 0
    %854 = vmatpush.bf16.xpose.msra.mxu0 0
    %855 = vmatpush.bf16.xpose.msra.mxu0 0
    %856 = vmatpush.bf16.xpose.msra.mxu0 0
    %857 = vmatpush.bf16.xpose.msra.mxu0 0
    %858 = vmatpush.bf16.xpose.msra.mxu0 %v849
    %859 = vmatmul.bf16.gmra.mxu0 %v846
    %v860 = vpop.f32.mrf.mxu0
    %v861 = vadd.f32 %v138, %v860
    %v862 = vpop.f32.mrf.mxu0
    %v863 = vadd.f32 %v139, %v862
    %864 = vdwg.mxu0
    %v865 = vsel %vm200, %v861, -inf
    %866 = vmax.xlane.f32.xlu0 %v865
    %v867 = vpop.xlane.xlu0 %866
    %v868 = vsel %vm200, %v863, -inf
    %869 = vmax.xlane.f32.xlu0 %v868
    %v870 = vpop.xlane.xlu0 %869
    %v871 = vsub.f32 %v861, %v867
    %v872 = vsub.f32 %v863, %v870
    %v873 = vmul.f32 %v871, 1.442695
    %v874 = vpow.pop %v873
    %v875 = vmul.f32 %v872, 1.442695
    %v876 = vpow.pop %v875
    %v877 = vsel %vm200, %v874, 0.0
    %878 = vadd.xlane.f32.xlu0 %v877
    %v879 = vpop.xlane.xlu0 %878
    %v880 = vsel %vm200, %v876, 0.0
    %881 = vadd.xlane.f32.xlu0 %v880
    %v882 = vpop.xlane.xlu0 %881
    %v883 = vrcp.pop %v879
    %v884 = vrcp.pop %v882
    %v885 = vmul.f32 %v874, %v883
    %v886 = vmul.f32 %v876, %v884
    %v887 = vpack.c.bf16 %v886, %v885
    %888 = vrot.lane.b32.xlu0 %v774, 56
    %v889 = vpop.permute.xlu0 %888
    %v892 = vsel %vm200, %v887, 0
    %894 = vmatpush.bf16.msra.mxu0 0
    %895 = vmatpush.bf16.msra.mxu0 0
    %896 = vmatpush.bf16.msra.mxu0 0
    %897 = vmatpush.bf16.msra.mxu0 0
    %898 = vmatpush.bf16.msra.mxu0 0
    %899 = vmatpush.bf16.msra.mxu0 0
    %900 = vmatpush.bf16.msra.mxu0 0
    %901 = vmatpush.bf16.msra.mxu0 %v889
    %902 = vmatmul.bf16.gmra.mxu0 %v892
    %v903 = vpop.f32.mrf.mxu0
    %v904 = vadd.f32 0.0, %v903
    %v905 = vpop.f32.mrf.mxu0
    %v906 = vadd.f32 0.0, %v905
    %907 = vdwg.mxu0
    %908 = vrot.lane.b32.xlu0 %v774, 112
    %v909 = vpop.permute.xlu0 %908
    %910 = vrot.lane.b32.xlu0 %v774, 80
    %v911 = vpop.permute.xlu0 %910
    %v913 = vsel %vm179, %v909, 0
    %v916 = vsel %vm179, %v911, 0
    %918 = vmatpush.bf16.xpose.msra.mxu0 0
    %919 = vmatpush.bf16.xpose.msra.mxu0 0
    %920 = vmatpush.bf16.xpose.msra.mxu0 0
    %921 = vmatpush.bf16.xpose.msra.mxu0 0
    %922 = vmatpush.bf16.xpose.msra.mxu0 0
    %923 = vmatpush.bf16.xpose.msra.mxu0 0
    %924 = vmatpush.bf16.xpose.msra.mxu0 0
    %925 = vmatpush.bf16.xpose.msra.mxu0 %v916
    %926 = vmatmul.bf16.gmra.mxu0 %v913
    %v927 = vpop.f32.mrf.mxu0
    %v928 = vadd.f32 %v138, %v927
    %v929 = vpop.f32.mrf.mxu0
    %v930 = vadd.f32 %v139, %v929
    %931 = vdwg.mxu0
    %v932 = vsel %vm200, %v928, -inf
    %933 = vmax.xlane.f32.xlu0 %v932
    %v934 = vpop.xlane.xlu0 %933
    %v935 = vsel %vm200, %v930, -inf
    %936 = vmax.xlane.f32.xlu0 %v935
    %v937 = vpop.xlane.xlu0 %936
    %v938 = vsub.f32 %v928, %v934
    %v939 = vsub.f32 %v930, %v937
    %v940 = vmul.f32 %v938, 1.442695
    %v941 = vpow.pop %v940
    %v942 = vmul.f32 %v939, 1.442695
    %v943 = vpow.pop %v942
    %v944 = vsel %vm200, %v941, 0.0
    %945 = vadd.xlane.f32.xlu0 %v944
    %v946 = vpop.xlane.xlu0 %945
    %v947 = vsel %vm200, %v943, 0.0
    %948 = vadd.xlane.f32.xlu0 %v947
    %v949 = vpop.xlane.xlu0 %948
    %v950 = vrcp.pop %v946
    %v951 = vrcp.pop %v949
    %v952 = vmul.f32 %v941, %v950
    %v953 = vmul.f32 %v943, %v951
    %v954 = vpack.c.bf16 %v953, %v952
    %955 = vrot.lane.b32.xlu0 %v774, 48
    %v956 = vpop.permute.xlu0 %955
    %v959 = vsel %vm200, %v954, 0
    %961 = vmatpush.bf16.msra.mxu0 0
    %962 = vmatpush.bf16.msra.mxu0 0
    %963 = vmatpush.bf16.msra.mxu0 0
    %964 = vmatpush.bf16.msra.mxu0 0
    %965 = vmatpush.bf16.msra.mxu0 0
    %966 = vmatpush.bf16.msra.mxu0 0
    %967 = vmatpush.bf16.msra.mxu0 0
    %968 = vmatpush.bf16.msra.mxu0 %v956
    %969 = vmatmul.bf16.gmra.mxu0 %v959
    %v970 = vpop.f32.mrf.mxu0
    %v971 = vadd.f32 0.0, %v970
    %v972 = vpop.f32.mrf.mxu0
    %v973 = vadd.f32 0.0, %v972
    %974 = vdwg.mxu0
    %975 = vrot.lane.b32.xlu0 %v774, 104
    %v976 = vpop.permute.xlu0 %975
    %977 = vrot.lane.b32.xlu0 %v774, 72
    %v978 = vpop.permute.xlu0 %977
    %v980 = vsel %vm179, %v976, 0
    %v983 = vsel %vm179, %v978, 0
    %985 = vmatpush.bf16.xpose.msra.mxu0 0
    %986 = vmatpush.bf16.xpose.msra.mxu0 0
    %987 = vmatpush.bf16.xpose.msra.mxu0 0
    %988 = vmatpush.bf16.xpose.msra.mxu0 0
    %989 = vmatpush.bf16.xpose.msra.mxu0 0
    %990 = vmatpush.bf16.xpose.msra.mxu0 0
    %991 = vmatpush.bf16.xpose.msra.mxu0 0
    %992 = vmatpush.bf16.xpose.msra.mxu0 %v983
    %993 = vmatmul.bf16.gmra.mxu0 %v980
    %v994 = vpop.f32.mrf.mxu0
    %v995 = vadd.f32 %v138, %v994
    %v996 = vpop.f32.mrf.mxu0
    %v997 = vadd.f32 %v139, %v996
    %998 = vdwg.mxu0
    %v999 = vsel %vm200, %v995, -inf
    %1000 = vmax.xlane.f32.xlu0 %v999
    %v1001 = vpop.xlane.xlu0 %1000
    %v1002 = vsel %vm200, %v997, -inf
    %1003 = vmax.xlane.f32.xlu0 %v1002
    %v1004 = vpop.xlane.xlu0 %1003
    %v1005 = vsub.f32 %v995, %v1001
    %v1006 = vsub.f32 %v997, %v1004
    %v1007 = vmul.f32 %v1005, 1.442695
    %v1008 = vpow.pop %v1007
    %v1009 = vmul.f32 %v1006, 1.442695
    %v1010 = vpow.pop %v1009
    %v1011 = vsel %vm200, %v1008, 0.0
    %1012 = vadd.xlane.f32.xlu0 %v1011
    %v1013 = vpop.xlane.xlu0 %1012
    %v1014 = vsel %vm200, %v1010, 0.0
    %1015 = vadd.xlane.f32.xlu0 %v1014
    %v1016 = vpop.xlane.xlu0 %1015
    %v1017 = vrcp.pop %v1013
    %v1018 = vrcp.pop %v1016
    %v1019 = vmul.f32 %v1008, %v1017
    %v1020 = vmul.f32 %v1010, %v1018
    %v1021 = vpack.c.bf16 %v1020, %v1019
    %1022 = vrot.lane.b32.xlu0 %v774, 40
    %v1023 = vpop.permute.xlu0 %1022
    %v1026 = vsel %vm200, %v1021, 0
    %1028 = vmatpush.bf16.msra.mxu0 0
    %1029 = vmatpush.bf16.msra.mxu0 0
    %1030 = vmatpush.bf16.msra.mxu0 0
    %1031 = vmatpush.bf16.msra.mxu0 0
    %1032 = vmatpush.bf16.msra.mxu0 0
    %1033 = vmatpush.bf16.msra.mxu0 0
    %1034 = vmatpush.bf16.msra.mxu0 0
    %1035 = vmatpush.bf16.msra.mxu0 %v1023
    %1036 = vmatmul.bf16.gmra.mxu0 %v1026
    %v1037 = vpop.f32.mrf.mxu0
    %v1038 = vadd.f32 0.0, %v1037
    %v1039 = vpop.f32.mrf.mxu0
    %v1040 = vadd.f32 0.0, %v1039
    %1041 = vdwg.mxu0
    %1044 = vrot.lane.b32.xlu0 %v904, 8
    %v1045 = vpop.permute.xlu0 %1044
    %1046 = vrot.lane.b32.xlu0 %v906, 8
    %v1047 = vpop.permute.xlu0 %1046
    %1052 = vrot.lane.b32.xlu0 %v971, 16
    %v1053 = vpop.permute.xlu0 %1052
    %1054 = vrot.lane.b32.xlu0 %v973, 16
    %v1055 = vpop.permute.xlu0 %1054
    %1060 = vrot.lane.b32.xlu0 %v1038, 24
    %v1061 = vpop.permute.xlu0 %1060
    %1062 = vrot.lane.b32.xlu0 %v1040, 24
    %v1063 = vpop.permute.xlu0 %1062
    %v1066 = vsel %vm179, %v837, %v1045
    %v1067 = vsel %vm179, %v839, %v1047
    %v1068 = vsel %vm200, %v1066, %v1053
    %v1069 = vsel %vm200, %v1067, %v1055
    %v1070 = vsel %vm473, %v1068, %v1061
    %v1071 = vsel %vm473, %v1069, %v1063
    %v1072 = vpack.c.bf16 %v1071, %v1070
    %v1073 = vperm.slane %v76, 3
    %1074 = vrot.lane.b32.xlu0 %v753, 32
    %v1075 = vpop.permute.xlu0 %1074
    %1076 = vrot.lane.b32.xlu0 %v754, 32
    %v1077 = vpop.permute.xlu0 %1076
    %v1081 = vsel %vm80, %v1072, 0
    %1083 = vmatpush.bf16.msra.mxu0 0
    %1084 = vmatpush.bf16.msra.mxu0 0
    %1085 = vmatpush.bf16.msra.mxu0 0
    %1086 = vmatpush.bf16.msra.mxu0 0
    %1087 = vmatpush.bf16.msra.mxu0 0
    %1088 = vmatpush.bf16.msra.mxu0 0
    %1089 = vmatpush.bf16.msra.mxu0 %v1077
    %1090 = vmatpush.bf16.msra.mxu0 %v1075
    %1091 = vmatmul.bf16.gmra.mxu0 %v1081
    %v1092 = vpop.f32.mrf.mxu0
    %v1093 = vadd.f32 %v1073, %v1092
    %v1094 = vpop.f32.mrf.mxu0
    %v1095 = vadd.f32 %v1073, %v1094
    %1096 = vdwg.mxu0
    %v1097 = vadd.f32 %v736, %v1093
    %v1098 = vadd.f32 %v737, %v1095
    %v1099 = vsel %vm80, %v1097, 0.0
    %1100 = vadd.xlane.f32.xlu0 %v1099
    %v1101 = vpop.xlane.xlu0 %1100
    %v1102 = vsel %vm80, %v1098, 0.0
    %1103 = vadd.xlane.f32.xlu0 %v1102
    %v1104 = vpop.xlane.xlu0 %1103
    %v1105 = vmul.f32 %v1101, %v93
    %v1106 = vmul.f32 %v1104, %v93
    %v1107 = vsub.f32 %v1097, %v1105
    %v1108 = vsub.f32 %v1098, %v1106
    %v1109 = vmul.f32 %v1107, %v1107
    %v1110 = vmul.f32 %v1108, %v1108
    %v1111 = vsel %vm80, %v1109, 0.0
    %1112 = vadd.xlane.f32.xlu0 %v1111
    %v1113 = vpop.xlane.xlu0 %1112
    %v1114 = vsel %vm80, %v1110, 0.0
    %1115 = vadd.xlane.f32.xlu0 %v1114
    %v1116 = vpop.xlane.xlu0 %1115
    %v1117 = vmul.f32 %v1113, %v93
    %v1118 = vmul.f32 %v1116, %v93
    %v1119 = vadd.f32 %v1117, 1e-12
    %v1120 = vadd.f32 %v1118, 1e-12
    %v1121 = vrsqrt.pop %v1119
    %v1122 = vmul.f32 %v1121, %v1119
    %v1123 = vmul.f32 %v1122, %v1121
    %v1124 = vmul.f32 0.5, %v1123
    %v1125 = vsub.f32 1.5, %v1124
    %v1126 = vmul.f32 %v1121, %v1125
    %vm1127 = vweird.f32 %v1119
    %vm1128 = vweird.f32 %v1121
    %vm1129 = vmor %vm1127, %vm1128
    %v1130 = vsel %vm1129, %v1121, %v1126
    %v1131 = vrsqrt.pop %v1120
    %v1132 = vmul.f32 %v1131, %v1120
    %v1133 = vmul.f32 %v1132, %v1131
    %v1134 = vmul.f32 0.5, %v1133
    %v1135 = vsub.f32 1.5, %v1134
    %v1136 = vmul.f32 %v1131, %v1135
    %vm1137 = vweird.f32 %v1120
    %vm1138 = vweird.f32 %v1131
    %vm1139 = vmor %vm1137, %vm1138
    %v1140 = vsel %vm1139, %v1131, %v1136
    %v1141 = vmul.f32 %v1107, %v1130
    %v1142 = vmul.f32 %v1108, %v1140
    %v1143 = vperm.slane %v76, 4
    %v1144 = vmul.f32 %v1141, %v1143
    %v1145 = vmul.f32 %v1142, %v1143
    %v1146 = vperm.slane %v76, 5
    %v1147 = vadd.f32 %v1144, %v1146
    %v1148 = vadd.f32 %v1145, %v1146
    %v1149 = vpack.c.bf16 %v1148, %v1147
    %s1150 = scalar_lea.vmem %s3, 16
    %v1151 = vld [vmem:[%s1150] sm:$0xf]
    %v1152 = vld [vmem:[%s1150 + $0x4] sm:$0xf]
    %v1153 = vld [vmem:[%s1150 + $0x8] sm:$0xf]
    %v1154 = vld [vmem:[%s1150 + $0xc] sm:$0xf]
    %v1155 = vperm.slane %v76, 6
    %v1160 = vunpack.c.l.b16 %v1151
    %v1161 = vunpack.c.l.b16 %v1152
    %v1162 = vunpack.c.l.b16 %v1153
    %v1163 = vunpack.c.l.b16 %v1154
    %v1164 = vpack.c.b16 %v1161, %v1160
    %v1165 = vpack.c.b16 %v1163, %v1162
    %v1169 = vsel %vm80, %v1149, 0
    %1171 = vmatpush.bf16.msra.mxu0 0
    %1172 = vmatpush.bf16.msra.mxu0 0
    %1173 = vmatpush.bf16.msra.mxu0 0
    %1174 = vmatpush.bf16.msra.mxu0 0
    %1175 = vmatpush.bf16.msra.mxu0 0
    %1176 = vmatpush.bf16.msra.mxu0 0
    %1177 = vmatpush.bf16.msra.mxu0 %v1165
    %1178 = vmatpush.bf16.msra.mxu0 %v1164
    %1179 = vmatmul.bf16.gmra.mxu0 %v1169
    %v1180 = vpop.f32.mrf.mxu0
    %v1181 = vadd.f32 %v1155, %v1180
    %v1182 = vpop.f32.mrf.mxu0
    %v1183 = vadd.f32 %v1155, %v1182
    %1184 = vdwg.mxu0
    %v1185 = vmul.f32 %v1181, %v1181
    %v1186 = vmul.f32 %v1183, %v1183
    %v1187 = vmul.f32 %v1181, %v1185
    %v1188 = vmul.f32 %v1183, %v1186
    %v1189 = vmul.f32 %v1187, 0.044715
    %v1190 = vmul.f32 %v1188, 0.044715
    %v1191 = vadd.f32 %v1181, %v1189
    %v1192 = vadd.f32 %v1183, %v1190
    %v1193 = vmul.f32 %v1191, 0.7978846
    %v1194 = vmul.f32 %v1192, 0.7978846
    %v1195 = vtanh.pop %v1193
    %v1196 = vtanh.pop %v1194
    %v1197 = vadd.f32 %v1195, 1.0
    %v1198 = vadd.f32 %v1196, 1.0
    %v1199 = vmul.f32 %v1197, 0.5
    %v1200 = vmul.f32 %v1198, 0.5
    %v1201 = vmul.f32 %v1181, %v1199
    %v1202 = vmul.f32 %v1183, %v1200
    %v1203 = vpack.c.bf16 %v1202, %v1201
    %s1204 = scalar_lea.vmem %s4, 64
    %v1205 = vld [vmem:[%s1204] sm:$0xf]
    %v1206 = vld [vmem:[%s1204 + $0x4] sm:$0xf]
    %v1207 = vld [vmem:[%s1204 + $0x8] sm:$0xf]
    %v1208 = vld [vmem:[%s1204 + $0xc] sm:$0xf]
    %v1209 = vld [vmem:[%s1204 + $0x10] sm:$0xf]
    %v1210 = vld [vmem:[%s1204 + $0x14] sm:$0xf]
    %v1211 = vld [vmem:[%s1204 + $0x18] sm:$0xf]
    %v1212 = vld [vmem:[%s1204 + $0x1c] sm:$0xf]
    %v1213 = vld [vmem:[%s1204 + $0x20] sm:$0xf]
    %v1214 = vld [vmem:[%s1204 + $0x24] sm:$0xf]
    %v1215 = vld [vmem:[%s1204 + $0x28] sm:$0xf]
    %v1216 = vld [vmem:[%s1204 + $0x2c] sm:$0xf]
    %v1217 = vld [vmem:[%s1204 + $0x30] sm:$0xf]
    %v1218 = vld [vmem:[%s1204 + $0x34] sm:$0xf]
    %v1219 = vld [vmem:[%s1204 + $0x38] sm:$0xf]
    %v1220 = vld [vmem:[%s1204 + $0x3c] sm:$0xf]
    %v1221 = vperm.slane %v76, 7
    %v1238 = vunpack.c.l.b16 %v1205
    %v1239 = vunpack.c.l.b16 %v1206
    %v1240 = vunpack.c.l.b16 %v1207
    %v1241 = vunpack.c.l.b16 %v1208
    %v1242 = vunpack.c.l.b16 %v1209
    %v1243 = vunpack.c.l.b16 %v1210
    %v1244 = vunpack.c.l.b16 %v1211
    %v1245 = vunpack.c.l.b16 %v1212
    %v1246 = vunpack.c.l.b16 %v1213
    %v1247 = vunpack.c.l.b16 %v1214
    %v1248 = vunpack.c.l.b16 %v1215
    %v1249 = vunpack.c.l.b16 %v1216
    %v1250 = vunpack.c.l.b16 %v1217
    %v1251 = vunpack.c.l.b16 %v1218
    %v1252 = vunpack.c.l.b16 %v1219
    %v1253 = vunpack.c.l.b16 %v1220
    %v1254 = vpack.c.b16 %v1239, %v1238
    %v1255 = vpack.c.b16 %v1241, %v1240
    %v1256 = vpack.c.b16 %v1243, %v1242
    %v1257 = vpack.c.b16 %v1245, %v1244
    %v1258 = vpack.c.b16 %v1247, %v1246
    %v1259 = vpack.c.b16 %v1249, %v1248
    %v1260 = vpack.c.b16 %v1251, %v1250
    %v1261 = vpack.c.b16 %v1253, %v1252
    %1270 = vmatpush.bf16.msra.mxu0 %v1261
    %1271 = vmatpush.bf16.msra.mxu0 %v1260
    %1272 = vmatpush.bf16.msra.mxu0 %v1259
    %1273 = vmatpush.bf16.msra.mxu0 %v1258
    %1274 = vmatpush.bf16.msra.mxu0 %v1257
    %1275 = vmatpush.bf16.msra.mxu0 %v1256
    %1276 = vmatpush.bf16.msra.mxu0 %v1255
    %1277 = vmatpush.bf16.msra.mxu0 %v1254
    %1278 = vmatmul.bf16.gmra.mxu0 %v1203
    %v1279 = vpop.f32.mrf.mxu0
    %v1280 = vadd.f32 %v1221, %v1279
    %v1281 = vpop.f32.mrf.mxu0
    %v1282 = vadd.f32 %v1221, %v1281
    %1283 = vdwg.mxu0
    %v1284 = vadd.f32 %v1147, %v1280
    %v1285 = vadd.f32 %v1148, %v1282
    %v1286 = vsel %vm80, %v1284, 0.0
    %1287 = vadd.xlane.f32.xlu0 %v1286
    %v1288 = vpop.xlane.xlu0 %1287
    %v1289 = vsel %vm80, %v1285, 0.0
    %1290 = vadd.xlane.f32.xlu0 %v1289
    %v1291 = vpop.xlane.xlu0 %1290
    %v1292 = vmul.f32 %v1288, %v93
    %v1293 = vmul.f32 %v1291, %v93
    %v1294 = vsub.f32 %v1284, %v1292
    %v1295 = vsub.f32 %v1285, %v1293
    %v1296 = vmul.f32 %v1294, %v1294
    %v1297 = vmul.f32 %v1295, %v1295
    %v1298 = vsel %vm80, %v1296, 0.0
    %1299 = vadd.xlane.f32.xlu0 %v1298
    %v1300 = vpop.xlane.xlu0 %1299
    %v1301 = vsel %vm80, %v1297, 0.0
    %1302 = vadd.xlane.f32.xlu0 %v1301
    %v1303 = vpop.xlane.xlu0 %1302
    %v1304 = vmul.f32 %v1300, %v93
    %v1305 = vmul.f32 %v1303, %v93
    %v1306 = vadd.f32 %v1304, 1e-12
    %v1307 = vadd.f32 %v1305, 1e-12
    %v1308 = vrsqrt.pop %v1306
    %v1309 = vmul.f32 %v1308, %v1306
    %v1310 = vmul.f32 %v1309, %v1308
    %v1311 = vmul.f32 0.5, %v1310
    %v1312 = vsub.f32 1.5, %v1311
    %v1313 = vmul.f32 %v1308, %v1312
    %vm1314 = vweird.f32 %v1306
    %vm1315 = vweird.f32 %v1308
    %vm1316 = vmor %vm1314, %vm1315
    %v1317 = vsel %vm1316, %v1308, %v1313
    %v1318 = vrsqrt.pop %v1307
    %v1319 = vmul.f32 %v1318, %v1307
    %v1320 = vmul.f32 %v1319, %v1318
    %v1321 = vmul.f32 0.5, %v1320
    %v1322 = vsub.f32 1.5, %v1321
    %v1323 = vmul.f32 %v1318, %v1322
    %vm1324 = vweird.f32 %v1307
    %vm1325 = vweird.f32 %v1318
    %vm1326 = vmor %vm1324, %vm1325
    %v1327 = vsel %vm1326, %v1318, %v1323
    %v1328 = vmul.f32 %v1294, %v1317
    %v1329 = vmul.f32 %v1295, %v1327
    %v1330 = vperm.slane %v77, 0
    %v1331 = vmul.f32 %v1328, %v1330
    %v1332 = vmul.f32 %v1329, %v1330
    %v1333 = vperm.slane %v77, 1
    %v1334 = vadd.f32 %v1331, %v1333
    %v1335 = vadd.f32 %v1332, %v1333
    %v1337 = vrot.slane %v1335, 7
    %vm1339 = vcmask 1040384
    %v1340 = vsel %vm1339, %v1334, %v1337
    %v1341 = vld [vmem:[%s6] sm:$0xf]
    %v1342 = vld [vmem:[%s6 + $0x4] sm:$0xf]
    %v1343 = vld [vmem:[%s6 + $0x8] sm:$0xf]
    %v1344 = vld [vmem:[%s6 + $0xc] sm:$0xf]
    %v1345 = vld [vmem:[%s6 + $0x10] sm:$0xf]
    %v1346 = vld [vmem:[%s6 + $0x14] sm:$0xf]
    %v1347 = vld [vmem:[%s6 + $0x18] sm:$0xf]
    %v1348 = vld [vmem:[%s6 + $0x1c] sm:$0xf]
    %v1349 = vld [vmem:[%s6 + $0x20] sm:$0xf]
    %v1350 = vld [vmem:[%s6 + $0x24] sm:$0xf]
    %v1351 = vld [vmem:[%s6 + $0x28] sm:$0xf]
    %v1352 = vld [vmem:[%s6 + $0x2c] sm:$0xf]
    %v1353 = vld [vmem:[%s6 + $0x30] sm:$0xf]
    %v1354 = vld [vmem:[%s6 + $0x34] sm:$0xf]
    %v1355 = vld [vmem:[%s6 + $0x38] sm:$0xf]
    %v1356 = vld [vmem:[%s6 + $0x3c] sm:$0xf]
    %v1357 = vld [vmem:[%s6 + $0x40] sm:$0xf]
    %v1358 = vld [vmem:[%s6 + $0x44] sm:$0xf]
    %v1359 = vld [vmem:[%s6 + $0x48] sm:$0xf]
    %v1360 = vld [vmem:[%s6 + $0x4c] sm:$0xf]
    %v1361 = vld [vmem:[%s6 + $0x50] sm:$0xf]
    %v1362 = vld [vmem:[%s6 + $0x54] sm:$0xf]
    %v1363 = vld [vmem:[%s6 + $0x58] sm:$0xf]
    %v1364 = vld [vmem:[%s6 + $0x5c] sm:$0xf]
    %v1365 = vpack.c.bf16 %v1340, %v1340
    %v1366 = vperm.slane %v77, 2
    %v1371 = vunpack.c.l.b16 %v1341
    %v1372 = vunpack.c.l.b16 %v1342
    %v1373 = vunpack.c.l.b16 %v1343
    %v1374 = vunpack.c.l.b16 %v1344
    %v1375 = vpack.c.b16 %v1372, %v1371
    %v1376 = vpack.c.b16 %v1374, %v1373
    %v1380 = vsel %vm80, %v1365, 0
    %1382 = vmatpush.bf16.msra.mxu0 0
    %1383 = vmatpush.bf16.msra.mxu0 0
    %1384 = vmatpush.bf16.msra.mxu0 0
    %1385 = vmatpush.bf16.msra.mxu0 0
    %1386 = vmatpush.bf16.msra.mxu0 0
    %1387 = vmatpush.bf16.msra.mxu0 0
    %1388 = vmatpush.bf16.msra.mxu0 %v1376
    %1389 = vmatpush.bf16.msra.mxu0 %v1375
    %1390 = vmatmul.bf16.gmra.mxu0 %v1380
    %v1391 = vpop.f32.mrf.mxu0
    %v1392 = vadd.f32 %v1366, %v1391
    %v1393 = vpop.f32.mrf.mxu0
    %1394 = vdwg.mxu0
    %v1395 = vtanh.pop %v1392
    %v1396 = vpack.c.bf16 %v1395, %v1395
    %v1397 = vperm.slane %v77, 3
    %v1402 = vunpack.c.l.b16 %v1345
    %v1403 = vunpack.c.l.b16 %v1346
    %v1404 = vunpack.c.l.b16 %v1347
    %v1405 = vunpack.c.l.b16 %v1348
    %v1406 = vpack.c.b16 %v1403, %v1402
    %v1407 = vpack.c.b16 %v1405, %v1404
    %v1411 = vsel %vm80, %v1396, 0
    %1413 = vmatpush.bf16.msra.mxu0 0
    %1414 = vmatpush.bf16.msra.mxu0 0
    %1415 = vmatpush.bf16.msra.mxu0 0
    %1416 = vmatpush.bf16.msra.mxu0 0
    %1417 = vmatpush.bf16.msra.mxu0 0
    %1418 = vmatpush.bf16.msra.mxu0 0
    %1419 = vmatpush.bf16.msra.mxu0 %v1407
    %1420 = vmatpush.bf16.msra.mxu0 %v1406
    %1421 = vmatmul.bf16.gmra.mxu0 %v1411
    %v1422 = vpop.f32.mrf.mxu0
    %v1423 = vadd.f32 %v1397, %v1422
    %v1424 = vpop.f32.mrf.mxu0
    %1425 = vdwg.mxu0
    %v1426 = vmax.f32 %v1423, 0.0
    %v1427 = vpack.c.bf16 %v1426, %v1426
    %v1428 = vperm.slane %v77, 4
    %v1445 = vunpack.c.l.b16 %v1349
    %v1446 = vunpack.c.l.b16 %v1350
    %v1447 = vunpack.c.l.b16 %v1351
    %v1448 = vunpack.c.l.b16 %v1352
    %v1449 = vunpack.c.l.b16 %v1353
    %v1450 = vunpack.c.l.b16 %v1354
    %v1451 = vunpack.c.l.b16 %v1355
    %v1452 = vunpack.c.l.b16 %v1356
    %v1453 = vunpack.c.l.b16 %v1357
    %v1454 = vunpack.c.l.b16 %v1358
    %v1455 = vunpack.c.l.b16 %v1359
    %v1456 = vunpack.c.l.b16 %v1360
    %v1457 = vunpack.c.l.b16 %v1361
    %v1458 = vunpack.c.l.b16 %v1362
    %v1459 = vunpack.c.l.b16 %v1363
    %v1460 = vunpack.c.l.b16 %v1364
    %v1461 = vpack.c.b16 %v1446, %v1445
    %v1462 = vpack.c.b16 %v1448, %v1447
    %v1463 = vpack.c.b16 %v1450, %v1449
    %v1464 = vpack.c.b16 %v1452, %v1451
    %v1465 = vpack.c.b16 %v1454, %v1453
    %v1466 = vpack.c.b16 %v1456, %v1455
    %v1467 = vpack.c.b16 %v1458, %v1457
    %v1468 = vpack.c.b16 %v1460, %v1459
    %1477 = vmatpush.bf16.msra.mxu0 %v1468
    %1478 = vmatpush.bf16.msra.mxu0 %v1467
    %1479 = vmatpush.bf16.msra.mxu0 %v1466
    %1480 = vmatpush.bf16.msra.mxu0 %v1465
    %1481 = vmatpush.bf16.msra.mxu0 %v1464
    %1482 = vmatpush.bf16.msra.mxu0 %v1463
    %1483 = vmatpush.bf16.msra.mxu0 %v1462
    %1484 = vmatpush.bf16.msra.mxu0 %v1461
    %1485 = vmatmul.bf16.gmra.mxu0 %v1427
    %v1486 = vpop.f32.mrf.mxu0
    %v1487 = vadd.f32 %v1428, %v1486
    %v1488 = vpop.f32.mrf.mxu0
    %1489 = vdwg.mxu0
    %1490 = vst [vmem:[#allocation8] sm:$0x3] %v1487
    // Predicated region
    $region42: #{tpu_custom_call.1} parent=1 // pred_check
      _
    $region43: #{tpu_custom_call.1} parent=1 // pred_check_branch
      %1492 = sbr.rel (0) target = $region45
    $region44: #{tpu_custom_call.1} parent=1 // pred_region
      %1494 = vsyncadd [#allocation4], 0
      %s1496 = sshll.u32 [#allocation8], 4
      %s1497 = int_to_ptr.vmem [resolvable:$true] %s1496
      %s1498 = sshll.u32 %s7, 4
      %s1499 = int_to_ptr.hbm [resolvable:$true] %s1498
      %1501 = dma.vmem_to_hbm [thread:$0]  %s1497, 32, %s1499, [#allocation4]
    $region45: #{tpu_custom_call.1} parent=1 // pred_fallthru
      _
    // Predicated region
    $region46: #{tpu_custom_call.1} parent=1 // pred_check
      _
    $region47: #{tpu_custom_call.1} parent=1 // pred_check_branch
      %1503 = sbr.rel (0) target = $region49
    $region48: #{tpu_custom_call.1} parent=1 // pred_region
      %1505 = dma.done [#allocation4], 32
    $region49: #{tpu_custom_call.1} parent=1 // pred_fallthru
      _
    %1506 = vsyncpa [#allocation3], 1
    %1507 = vsyncpa [#allocation6], 1
    %1508 = vsyncpa [#allocation4], 1

</llo_original>
